<compile_context>
chip_gen: v5e
topology: v5e:2x2
jax: 0.10.0
libtpu: 0.0.40
codegen_flags: <defaults>
</compile_context>

<pallas_src>
import functools

import jax
import jax.numpy as jnp
from jax import lax
from jax.experimental import pallas as pl


_NEG_BIG = -9.0e15  # torch: zero_vec = -9e15 * ones_like(e)
_DN_T = (((0,), (0,)), ((), ()))  # dot_general: contract lhs axis 0 with rhs axis 0


# ----------------------------------------------------------------------------- in-kernel helpers


def _elu(x):
    # ELU with the exp argument clamped so the dead select branch cannot overflow.
    return jnp.where(x > 0, x, jnp.exp(jnp.minimum(x, 0.0)) - 1.0)


def _leaky_relu(x, neg_slope):
    return jnp.where(x > 0, x, neg_slope * x)


def _row_softmax(logits):
    # softmax over the last (lane) axis.
    m = jnp.max(logits, axis=-1, keepdims=True)
    p = jnp.exp(logits - m)
    return p * pl.reciprocal(jnp.sum(p, axis=-1, keepdims=True), approx=True)


def _dgat_layer(x0, adjT_stack_list, w_fused, *, n_heads, neg_slope, concat):
    """One DGATLayer.

    x0              : (N, F_in)  features of batch element 0 (torch.mm(input[0], w)).
    adjT_stack_list : per adjacency, (H*N, N) = adj.T tiled H times along sublanes.
    w_fused         : (F_in, H*F_out + 2H); last 2H cols are per-head W@a_src / W@a_dst.
    Returns one (N, H*F_out) [concat] or (N, F_out) [mean] matrix per adjacency.
    """
    N = x0.shape[0]
    H = n_heads
    f_out = (w_fused.shape[1] - 2 * H) // H
    HF = H * f_out

    # Single fused projection: h for all heads + both attention logit vectors.
    hc = jnp.dot(x0, w_fused, preferred_element_type=jnp.float32)       # (N, HF + 2H)

    e_blocks = []
    v_blocks = []
    zeros = jnp.zeros((N, f_out), jnp.float32) if concat else None
    for hh in range(H):
        h_h = hc[:, hh * f_out:(hh + 1) * f_out]                         # (N, F_out)
        f_src = hc[:, HF + hh:HF + hh + 1]                               # (N, 1)
        f_dst = hc[:, HF + H + hh:HF + H + hh + 1]                       # (N, 1)
        # Transposed logits: eT[j, i] = leaky_relu(f_src[i] + f_dst[j]).
        e_blocks.append(_leaky_relu(f_dst + f_src.T, neg_slope))         # (N, N)
        if concat:
            cols = [zeros] * H
            cols[hh] = h_h
            v_blocks.append(jnp.concatenate(cols, axis=1))               # block-diagonal row block
        else:
            v_blocks.append(h_h)
    eT = jnp.concatenate(e_blocks, axis=0)                               # (H*N, N)
    V = jnp.concatenate(v_blocks, axis=0)                                # (H*N, H*F_out | F_out)

    outs = []
    inv_h = 1.0 / H
    for adjT_stack in adjT_stack_list:
        att = jnp.where(adjT_stack > 0, eT, _NEG_BIG)
        # Row softmax over lanes == torch F.softmax(attention, dim=1) on (B, N, N).
        att = _row_softmax(att)                                          # (H*N, N)
        # hp[i, :] = sum over (head, j) of att[head*N + j, i] * V[head*N + j, :]
        hp = lax.dot_general(att, V, _DN_T, preferred_element_type=jnp.float32)
        if concat:
            outs.append(_elu(hp))           # per-head ELU commutes with the lane concat
        else:
            outs.append(_elu(hp * inv_h))   # head-sum already folded into the dot
    return outs


def _graph_conv_stacked(x2d, adj_list, w, b, n_per):
    # DiffPool GraphConv, batch-stacked: y = adj @ (x @ W) + b ; L2 row-normalise.
    xw = jnp.dot(x2d, w, preferred_element_type=jnp.float32)             # (B*N, F_out)
    ys = [jnp.dot(adj_b, xw[i * n_per:(i + 1) * n_per],
                  preferred_element_type=jnp.float32)
          for i, adj_b in enumerate(adj_list)]
    y = jnp.concatenate(ys, axis=0) + b                                  # (B*N, F_out)
    ss = jnp.sum(y * y, axis=-1, keepdims=True)
    return y * lax.rsqrt(jnp.maximum(ss, 1e-24))   # == y / max(||y||_2, 1e-12)


# ----------------------------------------------------------------------------- fused kernel


def _fused_forward_kernel(x_ref, adj_ref, p_ref, out_ref, *, layout, n_heads, neg_slope):
    B, N, Din = x_ref.shape
    H = n_heads
    x = x_ref[...]
    adj = adj_ref[...]
    P = p_ref[...]

    def blk(name):
        r, nr, nc = layout[name]
        return P[r:r + nr, :nc]

    x0 = x[0]                                                            # (N, Din)
    adj_list = [adj[b] for b in range(B)]
    adjT_list = [a.T for a in adj_list]
    # Stacked (H*N, N) transposed-adjacency masks, shared by conv_first / conv_last.
    adjT_stack = [jnp.tile(t, (H, 1)) for t in adjT_list]

    # --- pre-pool DGAT stack --------------------------------------------------
    # conv_first is consumed only through input[0] by conv_last -> batch 0 only.
    h1 = _dgat_layer(x0, adjT_stack[:1], blk("w1"),
                     n_heads=H, neg_slope=neg_slope, concat=True)[0]     # (N, H*hidden)
    emb = _dgat_layer(h1, adjT_stack, blk("w2"),
                      n_heads=H, neg_slope=neg_slope, concat=False)      # B x (N, E)

    # --- assignment GNN (batch-stacked) + DiffPool ------------------------------
    x2d = x.reshape(B * N, Din)
    a_h = _graph_conv_stacked(x2d, adj_list, blk("gc1w"), blk("gc1b"), N)
    a_e = _graph_conv_stacked(a_h, adj_list, blk("gc2w"), blk("gc2b"), N)
    logits = jnp.dot(a_e, blk("predw"), preferred_element_type=jnp.float32) + blk("predb")
    S = _row_softmax(logits)                                             # (B*N, K)
    S_list = [S[b * N:(b + 1) * N] for b in range(B)]                    # B x (N, K)

    # Pooled adjacency, built directly in transposed form: (S^T A S)^T = S^T A^T S.
    adjT_pool = [lax.dot_general(S_b,
                                 jnp.dot(adjT_b, S_b, preferred_element_type=jnp.float32),
                                 _DN_T, preferred_element_type=jnp.float32)
                 for S_b, adjT_b in zip(S_list, adjT_list)]              # B x (K, K)
    # Pooled features S^T emb: only batch 0 is live (post-pool projection uses x[0]).
    x_pool0 = lax.dot_general(S_list[0], emb[0], _DN_T,
                              preferred_element_type=jnp.float32)        # (K, E)
    adjT_pool_stack = [jnp.tile(t, (H, 1)) for t in adjT_pool]

    # --- post-pool DGAT stack ---------------------------------------------------
    h2 = _dgat_layer(x_pool0, adjT_pool_stack[:1], blk("w3"),
                     n_heads=H, neg_slope=neg_slope, concat=True)[0]     # (K, H*hidden)
    emb2 = _dgat_layer(h2, adjT_pool_stack, blk("w4"),
                       n_heads=H, neg_slope=neg_slope, concat=False)     # B x (K, E)

    # --- readout (max over nodes) + final map_model Linear ----------------------
    feats = [jnp.concatenate([jnp.max(emb[b], axis=0, keepdims=True),
                              jnp.max(emb2[b], axis=0, keepdims=True)], axis=-1)
             for b in range(B)]
    output = jnp.concatenate(feats, axis=0)                              # (B, 2E)
    out_ref[...] = jnp.dot(output, blk("mapw"),
                           preferred_element_type=jnp.float32) + blk("mapb")


# ----------------------------------------------------------------------------- wrapper


def _fuse_head_params(w, a):
    """(H, F_in, F_out) weights + (H, 2*F_out, 1) attention vecs -> (F_in, H*F_out + 2H)."""
    H, Fi, Fo = w.shape
    a_src = a[:, :Fo, 0]                                                  # (H, F_out)
    a_dst = a[:, Fo:, 0]                                                  # (H, F_out)
    w_flat = jnp.transpose(w, (1, 0, 2)).reshape(Fi, H * Fo)
    c_src = jnp.einsum("hio,ho->ih", w, a_src)                            # (F_in, H)
    c_dst = jnp.einsum("hio,ho->ih", w, a_dst)                            # (F_in, H)
    return jnp.concatenate([w_flat, c_src, c_dst], axis=1)


def _pack_params(mats):
    """Pack named 2D matrices into one blob; rows padded to multiples of 8 so every
    in-kernel slice starts sublane-aligned.  Returns (blob, {name: (row, rows, cols)})."""
    width = max(int(m.shape[1]) for m in mats.values())
    layout = {}
    rows = []
    r = 0
    for name, m in mats.items():
        nr, nc = int(m.shape[0]), int(m.shape[1])
        pr = -(-nr // 8) * 8
        layout[name] = (r, nr, nc)
        rows.append(jnp.pad(m.astype(jnp.float32), ((0, pr - nr), (0, width - nc))))
        r += pr
    return jnp.concatenate(rows, axis=0), layout


def soft_pooling_dgat_forward(params, x, adj, batch_num_nodes=None):
    # batch_num_nodes is unused by the reference forward (embedding_mask is always None).
    del batch_num_nodes
    B = x.shape[0]
    H = params["conv_first_w"].shape[0]
    E = params["conv_last_w"].shape[-1]

    mats = {
        "w1": _fuse_head_params(params["conv_first_w"], params["conv_first_a"]),
        "w2": _fuse_head_params(params["conv_last_w"], params["conv_last_a"]),
        "w3": _fuse_head_params(params["post_first_w"], params["post_first_a"]),
        "w4": _fuse_head_params(params["post_last_w"], params["post_last_a"]),
        "gc1w": params["assign_gc1_w"], "gc1b": params["assign_gc1_b"].reshape(1, -1),
        "gc2w": params["assign_gc2_w"], "gc2b": params["assign_gc2_b"].reshape(1, -1),
        "predw": params["assign_pred_w"], "predb": params["assign_pred_b"].reshape(1, -1),
        "mapw": params["map_w"], "mapb": params["map_b"].reshape(1, -1),
    }
    blob, layout = _pack_params(mats)

    kernel = functools.partial(_fused_forward_kernel, layout=layout,
                               n_heads=H, neg_slope=0.2)
    # Single grid-less pallas_call: 3 operands (x, adj, packed params), everything lives
    # in VMEM for the whole kernel; intermediates never touch HBM.
    return pl.pallas_call(
        kernel,
        out_shape=jax.ShapeDtypeStruct((B, E), jnp.float32),
    )(x, adj, blob)


# ----------------------------------------------------------------------------- params


def _xavier_uniform(key, shape, fan_in, fan_out, gain):
    bound = gain * (6.0 / (fan_in + fan_out)) ** 0.5
    return jax.random.uniform(key, shape, jnp.float32, -bound, bound)


def init_params(key, input_dim, hidden_dim, embedding_dim, assign_hidden_dim,
                assign_dim, n_heads):
    gain = 2.0 ** 0.5  # nn.init.calculate_gain('relu')
    ks = jax.random.split(key, 12)

    def head_stack(k, d_in, d_out):
        w = _xavier_uniform(k, (n_heads, d_in, d_out), d_in, d_out, gain)
        a = jnp.zeros((n_heads, 2 * d_out, 1), jnp.float32)  # init.constant(a, 0.0)
        return w, a

    def lin(kw, kb, d_in, d_out):
        bound = 1.0 / (d_in ** 0.5)
        w = jax.random.uniform(kw, (d_in, d_out), jnp.float32, -bound, bound)
        b = jax.random.uniform(kb, (d_out,), jnp.float32, -bound, bound)
        return w, b

    p = {}
    p["conv_first_w"], p["conv_first_a"] = head_stack(ks[0], input_dim, hidden_dim)
    p["conv_last_w"], p["conv_last_a"] = head_stack(ks[1], hidden_dim * n_heads, embedding_dim)
    p["post_first_w"], p["post_first_a"] = head_stack(ks[2], embedding_dim, hidden_dim)
    p["post_last_w"], p["post_last_a"] = head_stack(ks[3], hidden_dim * n_heads, embedding_dim)

    p["assign_gc1_w"] = _xavier_uniform(ks[4], (input_dim, assign_hidden_dim),
                                        input_dim, assign_hidden_dim, gain)
    p["assign_gc1_b"] = jnp.zeros((assign_hidden_dim,), jnp.float32)
    p["assign_gc2_w"] = _xavier_uniform(ks[5], (assign_hidden_dim, assign_dim),
                                        assign_hidden_dim, assign_dim, gain)
    p["assign_gc2_b"] = jnp.zeros((assign_dim,), jnp.float32)

    p["assign_pred_w"], p["assign_pred_b"] = lin(ks[6], ks[7], assign_dim, assign_dim)
    p["map_w"], p["map_b"] = lin(ks[8], ks[9], 2 * embedding_dim, embedding_dim)
    return p


# ----------------------------------------------------------------------------- main


if __name__ == "__main__":
    key = jax.random.PRNGKey(0)
    B, N = 2, 16                        # batch, max_num_nodes
    input_dim, hidden_dim, embedding_dim = 12, 16, 24
    assign_hidden_dim = 16
    assign_ratio = 0.25
    assign_dim = int(N * assign_ratio)  # 4
    n_heads = 2                         # num_heads=[2, 2] (see header comment)

    kx, kadj, kp = jax.random.split(key, 3)
    x = jax.random.normal(kx, (B, N, input_dim), jnp.float32)
    r = jax.random.uniform(kadj, (B, N, N))
    adj = (r + jnp.transpose(r, (0, 2, 1)) > 1.0).astype(jnp.float32)
    adj = jnp.maximum(adj, jnp.eye(N, dtype=jnp.float32)[None])   # self loops

    params = init_params(kp, input_dim, hidden_dim, embedding_dim,
                         assign_hidden_dim, assign_dim, n_heads)

    fwd = jax.jit(soft_pooling_dgat_forward)
    ypred = fwd(params, x, adj)
    jax.block_until_ready(ypred)
    assert ypred.shape == (B, embedding_dim)
    assert bool(jnp.all(jnp.isfinite(ypred)))
    print("KERNEL_OK")
</pallas_src>

<mosaic_0001>
module attributes {stable_mosaic.version = 11 : i64} {
  func.func @_fused_forward_kernel(%arg0: memref<2x16x12xf32, #tpu.memory_space<vmem>>, %arg1: memref<2x16x16xf32, #tpu.memory_space<vmem>>, %arg2: memref<224x52xf32, #tpu.memory_space<vmem>>, %arg3: memref<2x24xf32, #tpu.memory_space<vmem>>) attributes {dimension_semantics = [], scalar_prefetch = 0 : i64, scratch_operands = 0 : i64, tpu.core_type = #tpu.core_type<tc>} {
    %c0 = arith.constant 0 : index
    %c0_0 = arith.constant 0 : index
    %c0_1 = arith.constant 0 : index
    %0 = vector.load %arg0[%c0, %c0_0, %c0_1] : memref<2x16x12xf32, #tpu.memory_space<vmem>>, vector<2x16x12xf32>
    %c0_2 = arith.constant 0 : index
    %c0_3 = arith.constant 0 : index
    %c0_4 = arith.constant 0 : index
    %1 = vector.load %arg1[%c0_2, %c0_3, %c0_4] : memref<2x16x16xf32, #tpu.memory_space<vmem>>, vector<2x16x16xf32>
    %c0_5 = arith.constant 0 : index
    %c0_6 = arith.constant 0 : index
    %2 = vector.load %arg2[%c0_5, %c0_6] : memref<224x52xf32, #tpu.memory_space<vmem>>, vector<224x52xf32>
    %3 = vector.extract_strided_slice %0 {offsets = [0, 0, 0], sizes = [1, 16, 12], strides = [1, 1, 1]} : vector<2x16x12xf32> to vector<1x16x12xf32>
    %4 = vector.shape_cast %3 : vector<1x16x12xf32> to vector<16x12xf32>
    %5 = vector.extract_strided_slice %1 {offsets = [0, 0, 0], sizes = [1, 16, 16], strides = [1, 1, 1]} : vector<2x16x16xf32> to vector<1x16x16xf32>
    %6 = vector.shape_cast %5 : vector<1x16x16xf32> to vector<16x16xf32>
    %7 = vector.extract_strided_slice %1 {offsets = [1, 0, 0], sizes = [1, 16, 16], strides = [1, 1, 1]} : vector<2x16x16xf32> to vector<1x16x16xf32>
    %8 = vector.shape_cast %7 : vector<1x16x16xf32> to vector<16x16xf32>
    %9 = tpu.transpose %6, [1, 0] : vector<16x16xf32> -> vector<16x16xf32>
    %10 = tpu.transpose %8, [1, 0] : vector<16x16xf32> -> vector<16x16xf32>
    %11 = tpu.concatenate %9, %9 in 0 : vector<16x16xf32>, vector<16x16xf32> -> vector<32x16xf32>
    %12 = tpu.concatenate %10, %10 in 0 : vector<16x16xf32>, vector<16x16xf32> -> vector<32x16xf32>
    %13 = vector.extract_strided_slice %2 {offsets = [0, 0], sizes = [12, 36], strides = [1, 1]} : vector<224x52xf32> to vector<12x36xf32>
    %cst = arith.constant dense<0.000000e+00> : vector<16x36xf32>
    %14 = tpu.matmul %4, %13, %cst {dimension_numbers = #tpu.dot_dimension_numbers<[1], [0], [0], [1], [0, 0, 1, 1], [], []>} : vector<16x12xf32>, vector<12x36xf32>, vector<16x36xf32> -> vector<16x36xf32>
    %cst_7 = arith.constant 0.000000e+00 : f32
    %15 = vector.broadcast %cst_7 : f32 to vector<16x16xf32>
    %16 = vector.extract_strided_slice %14 {offsets = [0, 0], sizes = [16, 16], strides = [1, 1]} : vector<16x36xf32> to vector<16x16xf32>
    %17 = vector.extract_strided_slice %14 {offsets = [0, 32], sizes = [16, 1], strides = [1, 1]} : vector<16x36xf32> to vector<16x1xf32>
    %18 = vector.extract_strided_slice %14 {offsets = [0, 34], sizes = [16, 1], strides = [1, 1]} : vector<16x36xf32> to vector<16x1xf32>
    %19 = tpu.transpose %17, [1, 0] : vector<16x1xf32> -> vector<1x16xf32>
    %20 = vector.broadcast %18 : vector<16x1xf32> to vector<16x16xf32>
    %21 = vector.broadcast %19 : vector<1x16xf32> to vector<16x16xf32>
    %22 = arith.addf %20, %21 : vector<16x16xf32>
    %cst_8 = arith.constant 0.000000e+00 : f32
    %23 = vector.broadcast %cst_8 : f32 to vector<16x16xf32>
    %24 = arith.cmpf ogt, %22, %23 : vector<16x16xf32>
    %cst_9 = arith.constant 2.000000e-01 : f32
    %25 = vector.broadcast %cst_9 : f32 to vector<16x16xf32>
    %26 = arith.mulf %25, %22 : vector<16x16xf32>
    %27 = arith.select %24, %22, %26 : vector<16x16xi1>, vector<16x16xf32>
    %28 = tpu.concatenate %16, %15 in 1 : vector<16x16xf32>, vector<16x16xf32> -> vector<16x32xf32>
    %29 = vector.extract_strided_slice %14 {offsets = [0, 16], sizes = [16, 16], strides = [1, 1]} : vector<16x36xf32> to vector<16x16xf32>
    %30 = vector.extract_strided_slice %14 {offsets = [0, 33], sizes = [16, 1], strides = [1, 1]} : vector<16x36xf32> to vector<16x1xf32>
    %31 = vector.extract_strided_slice %14 {offsets = [0, 35], sizes = [16, 1], strides = [1, 1]} : vector<16x36xf32> to vector<16x1xf32>
    %32 = tpu.transpose %30, [1, 0] : vector<16x1xf32> -> vector<1x16xf32>
    %33 = vector.broadcast %31 : vector<16x1xf32> to vector<16x16xf32>
    %34 = vector.broadcast %32 : vector<1x16xf32> to vector<16x16xf32>
    %35 = arith.addf %33, %34 : vector<16x16xf32>
    %cst_10 = arith.constant 0.000000e+00 : f32
    %36 = vector.broadcast %cst_10 : f32 to vector<16x16xf32>
    %37 = arith.cmpf ogt, %35, %36 : vector<16x16xf32>
    %cst_11 = arith.constant 2.000000e-01 : f32
    %38 = vector.broadcast %cst_11 : f32 to vector<16x16xf32>
    %39 = arith.mulf %38, %35 : vector<16x16xf32>
    %40 = arith.select %37, %35, %39 : vector<16x16xi1>, vector<16x16xf32>
    %41 = tpu.concatenate %15, %29 in 1 : vector<16x16xf32>, vector<16x16xf32> -> vector<16x32xf32>
    %42 = tpu.concatenate %27, %40 in 0 : vector<16x16xf32>, vector<16x16xf32> -> vector<32x16xf32>
    %43 = tpu.concatenate %28, %41 in 0 : vector<16x32xf32>, vector<16x32xf32> -> vector<32x32xf32>
    %cst_12 = arith.constant 0.000000e+00 : f32
    %44 = vector.broadcast %cst_12 : f32 to vector<32x16xf32>
    %45 = arith.cmpf ogt, %11, %44 : vector<32x16xf32>
    %cst_13 = arith.constant -9.000000e+15 : f32
    %46 = vector.broadcast %cst_13 : f32 to vector<32x16xf32>
    %47 = arith.select %45, %42, %46 : vector<32x16xi1>, vector<32x16xf32>
    %cst_14 = arith.constant dense<0xFF800000> : vector<32xf32>
    %48 = vector.multi_reduction <maximumf>, %47, %cst_14 [1] : vector<32x16xf32> to vector<32xf32>
    %49 = vector.shape_cast %48 : vector<32xf32> to vector<32x1xf32>
    %50 = vector.broadcast %49 : vector<32x1xf32> to vector<32x16xf32>
    %51 = arith.subf %47, %50 : vector<32x16xf32>
    %52 = math.exp %51 : vector<32x16xf32>
    %cst_15 = arith.constant dense<0.000000e+00> : vector<32xf32>
    %53 = vector.multi_reduction <add>, %52, %cst_15 [1] : vector<32x16xf32> to vector<32xf32>
    %54 = vector.shape_cast %53 : vector<32xf32> to vector<32x1xf32>
    %55 = tpu.reciprocal %54 {approx = true} : vector<32x1xf32> -> vector<32x1xf32>
    %56 = vector.broadcast %55 : vector<32x1xf32> to vector<32x16xf32>
    %57 = arith.mulf %52, %56 : vector<32x16xf32>
    %cst_16 = arith.constant dense<0.000000e+00> : vector<16x32xf32>
    %58 = tpu.matmul %57, %43, %cst_16 {dimension_numbers = #tpu.dot_dimension_numbers<[0], [0], [1], [1], [0, 1, 1, 1], [], []>} : vector<32x16xf32>, vector<32x32xf32>, vector<16x32xf32> -> vector<16x32xf32>
    %cst_17 = arith.constant 0.000000e+00 : f32
    %59 = vector.broadcast %cst_17 : f32 to vector<16x32xf32>
    %60 = arith.cmpf ogt, %58, %59 : vector<16x32xf32>
    %cst_18 = arith.constant 0.000000e+00 : f32
    %61 = vector.broadcast %cst_18 : f32 to vector<16x32xf32>
    %62 = arith.minimumf %58, %61 : vector<16x32xf32>
    %63 = math.exp %62 : vector<16x32xf32>
    %cst_19 = arith.constant 1.000000e+00 : f32
    %64 = vector.broadcast %cst_19 : f32 to vector<16x32xf32>
    %65 = arith.subf %63, %64 : vector<16x32xf32>
    %66 = arith.select %60, %58, %65 : vector<16x32xi1>, vector<16x32xf32>
    %67 = vector.extract_strided_slice %2 {offsets = [16, 0], sizes = [32, 52], strides = [1, 1]} : vector<224x52xf32> to vector<32x52xf32>
    %cst_20 = arith.constant dense<0.000000e+00> : vector<16x52xf32>
    %68 = tpu.matmul %66, %67, %cst_20 {dimension_numbers = #tpu.dot_dimension_numbers<[1], [0], [0], [1], [0, 0, 1, 1], [], []>} : vector<16x32xf32>, vector<32x52xf32>, vector<16x52xf32> -> vector<16x52xf32>
    %69 = vector.extract_strided_slice %68 {offsets = [0, 0], sizes = [16, 24], strides = [1, 1]} : vector<16x52xf32> to vector<16x24xf32>
    %70 = vector.extract_strided_slice %68 {offsets = [0, 48], sizes = [16, 1], strides = [1, 1]} : vector<16x52xf32> to vector<16x1xf32>
    %71 = vector.extract_strided_slice %68 {offsets = [0, 50], sizes = [16, 1], strides = [1, 1]} : vector<16x52xf32> to vector<16x1xf32>
    %72 = tpu.transpose %70, [1, 0] : vector<16x1xf32> -> vector<1x16xf32>
    %73 = vector.broadcast %71 : vector<16x1xf32> to vector<16x16xf32>
    %74 = vector.broadcast %72 : vector<1x16xf32> to vector<16x16xf32>
    %75 = arith.addf %73, %74 : vector<16x16xf32>
    %cst_21 = arith.constant 0.000000e+00 : f32
    %76 = vector.broadcast %cst_21 : f32 to vector<16x16xf32>
    %77 = arith.cmpf ogt, %75, %76 : vector<16x16xf32>
    %cst_22 = arith.constant 2.000000e-01 : f32
    %78 = vector.broadcast %cst_22 : f32 to vector<16x16xf32>
    %79 = arith.mulf %78, %75 : vector<16x16xf32>
    %80 = arith.select %77, %75, %79 : vector<16x16xi1>, vector<16x16xf32>
    %81 = vector.extract_strided_slice %68 {offsets = [0, 24], sizes = [16, 24], strides = [1, 1]} : vector<16x52xf32> to vector<16x24xf32>
    %82 = vector.extract_strided_slice %68 {offsets = [0, 49], sizes = [16, 1], strides = [1, 1]} : vector<16x52xf32> to vector<16x1xf32>
    %83 = vector.extract_strided_slice %68 {offsets = [0, 51], sizes = [16, 1], strides = [1, 1]} : vector<16x52xf32> to vector<16x1xf32>
    %84 = tpu.transpose %82, [1, 0] : vector<16x1xf32> -> vector<1x16xf32>
    %85 = vector.broadcast %83 : vector<16x1xf32> to vector<16x16xf32>
    %86 = vector.broadcast %84 : vector<1x16xf32> to vector<16x16xf32>
    %87 = arith.addf %85, %86 : vector<16x16xf32>
    %cst_23 = arith.constant 0.000000e+00 : f32
    %88 = vector.broadcast %cst_23 : f32 to vector<16x16xf32>
    %89 = arith.cmpf ogt, %87, %88 : vector<16x16xf32>
    %cst_24 = arith.constant 2.000000e-01 : f32
    %90 = vector.broadcast %cst_24 : f32 to vector<16x16xf32>
    %91 = arith.mulf %90, %87 : vector<16x16xf32>
    %92 = arith.select %89, %87, %91 : vector<16x16xi1>, vector<16x16xf32>
    %93 = tpu.concatenate %80, %92 in 0 : vector<16x16xf32>, vector<16x16xf32> -> vector<32x16xf32>
    %94 = tpu.concatenate %69, %81 in 0 : vector<16x24xf32>, vector<16x24xf32> -> vector<32x24xf32>
    %cst_25 = arith.constant 0.000000e+00 : f32
    %95 = vector.broadcast %cst_25 : f32 to vector<32x16xf32>
    %96 = arith.cmpf ogt, %11, %95 : vector<32x16xf32>
    %cst_26 = arith.constant -9.000000e+15 : f32
    %97 = vector.broadcast %cst_26 : f32 to vector<32x16xf32>
    %98 = arith.select %96, %93, %97 : vector<32x16xi1>, vector<32x16xf32>
    %cst_27 = arith.constant dense<0xFF800000> : vector<32xf32>
    %99 = vector.multi_reduction <maximumf>, %98, %cst_27 [1] : vector<32x16xf32> to vector<32xf32>
    %100 = vector.shape_cast %99 : vector<32xf32> to vector<32x1xf32>
    %101 = vector.broadcast %100 : vector<32x1xf32> to vector<32x16xf32>
    %102 = arith.subf %98, %101 : vector<32x16xf32>
    %103 = math.exp %102 : vector<32x16xf32>
    %cst_28 = arith.constant dense<0.000000e+00> : vector<32xf32>
    %104 = vector.multi_reduction <add>, %103, %cst_28 [1] : vector<32x16xf32> to vector<32xf32>
    %105 = vector.shape_cast %104 : vector<32xf32> to vector<32x1xf32>
    %106 = tpu.reciprocal %105 {approx = true} : vector<32x1xf32> -> vector<32x1xf32>
    %107 = vector.broadcast %106 : vector<32x1xf32> to vector<32x16xf32>
    %108 = arith.mulf %103, %107 : vector<32x16xf32>
    %cst_29 = arith.constant dense<0.000000e+00> : vector<16x24xf32>
    %109 = tpu.matmul %108, %94, %cst_29 {dimension_numbers = #tpu.dot_dimension_numbers<[0], [0], [1], [1], [0, 1, 1, 1], [], []>} : vector<32x16xf32>, vector<32x24xf32>, vector<16x24xf32> -> vector<16x24xf32>
    %cst_30 = arith.constant 5.000000e-01 : f32
    %110 = vector.broadcast %cst_30 : f32 to vector<16x24xf32>
    %111 = arith.mulf %109, %110 : vector<16x24xf32>
    %cst_31 = arith.constant 0.000000e+00 : f32
    %112 = vector.broadcast %cst_31 : f32 to vector<16x24xf32>
    %113 = arith.cmpf ogt, %111, %112 : vector<16x24xf32>
    %cst_32 = arith.constant 0.000000e+00 : f32
    %114 = vector.broadcast %cst_32 : f32 to vector<16x24xf32>
    %115 = arith.minimumf %111, %114 : vector<16x24xf32>
    %116 = math.exp %115 : vector<16x24xf32>
    %cst_33 = arith.constant 1.000000e+00 : f32
    %117 = vector.broadcast %cst_33 : f32 to vector<16x24xf32>
    %118 = arith.subf %116, %117 : vector<16x24xf32>
    %119 = arith.select %113, %111, %118 : vector<16x24xi1>, vector<16x24xf32>
    %cst_34 = arith.constant 0.000000e+00 : f32
    %120 = vector.broadcast %cst_34 : f32 to vector<32x16xf32>
    %121 = arith.cmpf ogt, %12, %120 : vector<32x16xf32>
    %cst_35 = arith.constant -9.000000e+15 : f32
    %122 = vector.broadcast %cst_35 : f32 to vector<32x16xf32>
    %123 = arith.select %121, %93, %122 : vector<32x16xi1>, vector<32x16xf32>
    %cst_36 = arith.constant dense<0xFF800000> : vector<32xf32>
    %124 = vector.multi_reduction <maximumf>, %123, %cst_36 [1] : vector<32x16xf32> to vector<32xf32>
    %125 = vector.shape_cast %124 : vector<32xf32> to vector<32x1xf32>
    %126 = vector.broadcast %125 : vector<32x1xf32> to vector<32x16xf32>
    %127 = arith.subf %123, %126 : vector<32x16xf32>
    %128 = math.exp %127 : vector<32x16xf32>
    %cst_37 = arith.constant dense<0.000000e+00> : vector<32xf32>
    %129 = vector.multi_reduction <add>, %128, %cst_37 [1] : vector<32x16xf32> to vector<32xf32>
    %130 = vector.shape_cast %129 : vector<32xf32> to vector<32x1xf32>
    %131 = tpu.reciprocal %130 {approx = true} : vector<32x1xf32> -> vector<32x1xf32>
    %132 = vector.broadcast %131 : vector<32x1xf32> to vector<32x16xf32>
    %133 = arith.mulf %128, %132 : vector<32x16xf32>
    %cst_38 = arith.constant dense<0.000000e+00> : vector<16x24xf32>
    %134 = tpu.matmul %133, %94, %cst_38 {dimension_numbers = #tpu.dot_dimension_numbers<[0], [0], [1], [1], [0, 1, 1, 1], [], []>} : vector<32x16xf32>, vector<32x24xf32>, vector<16x24xf32> -> vector<16x24xf32>
    %cst_39 = arith.constant 5.000000e-01 : f32
    %135 = vector.broadcast %cst_39 : f32 to vector<16x24xf32>
    %136 = arith.mulf %134, %135 : vector<16x24xf32>
    %cst_40 = arith.constant 0.000000e+00 : f32
    %137 = vector.broadcast %cst_40 : f32 to vector<16x24xf32>
    %138 = arith.cmpf ogt, %136, %137 : vector<16x24xf32>
    %cst_41 = arith.constant 0.000000e+00 : f32
    %139 = vector.broadcast %cst_41 : f32 to vector<16x24xf32>
    %140 = arith.minimumf %136, %139 : vector<16x24xf32>
    %141 = math.exp %140 : vector<16x24xf32>
    %cst_42 = arith.constant 1.000000e+00 : f32
    %142 = vector.broadcast %cst_42 : f32 to vector<16x24xf32>
    %143 = arith.subf %141, %142 : vector<16x24xf32>
    %144 = arith.select %138, %136, %143 : vector<16x24xi1>, vector<16x24xf32>
    %145 = vector.shape_cast %0 : vector<2x16x12xf32> to vector<32x12xf32>
    %146 = vector.extract_strided_slice %2 {offsets = [104, 0], sizes = [12, 16], strides = [1, 1]} : vector<224x52xf32> to vector<12x16xf32>
    %147 = vector.extract_strided_slice %2 {offsets = [120, 0], sizes = [1, 16], strides = [1, 1]} : vector<224x52xf32> to vector<1x16xf32>
    %cst_43 = arith.constant dense<0.000000e+00> : vector<32x16xf32>
    %148 = tpu.matmul %145, %146, %cst_43 {dimension_numbers = #tpu.dot_dimension_numbers<[1], [0], [0], [1], [0, 0, 1, 1], [], []>} : vector<32x12xf32>, vector<12x16xf32>, vector<32x16xf32> -> vector<32x16xf32>
    %149 = vector.extract_strided_slice %148 {offsets = [0, 0], sizes = [16, 16], strides = [1, 1]} : vector<32x16xf32> to vector<16x16xf32>
    %cst_44 = arith.constant dense<0.000000e+00> : vector<16x16xf32>
    %150 = tpu.matmul %6, %149, %cst_44 {dimension_numbers = #tpu.dot_dimension_numbers<[1], [0], [0], [1], [0, 0, 1, 1], [], []>} : vector<16x16xf32>, vector<16x16xf32>, vector<16x16xf32> -> vector<16x16xf32>
    %151 = vector.extract_strided_slice %148 {offsets = [16, 0], sizes = [16, 16], strides = [1, 1]} : vector<32x16xf32> to vector<16x16xf32>
    %cst_45 = arith.constant dense<0.000000e+00> : vector<16x16xf32>
    %152 = tpu.matmul %8, %151, %cst_45 {dimension_numbers = #tpu.dot_dimension_numbers<[1], [0], [0], [1], [0, 0, 1, 1], [], []>} : vector<16x16xf32>, vector<16x16xf32>, vector<16x16xf32> -> vector<16x16xf32>
    %153 = tpu.concatenate %150, %152 in 0 : vector<16x16xf32>, vector<16x16xf32> -> vector<32x16xf32>
    %154 = vector.broadcast %147 : vector<1x16xf32> to vector<32x16xf32>
    %155 = arith.addf %153, %154 : vector<32x16xf32>
    %156 = arith.mulf %155, %155 : vector<32x16xf32>
    %cst_46 = arith.constant dense<0.000000e+00> : vector<32xf32>
    %157 = vector.multi_reduction <add>, %156, %cst_46 [1] : vector<32x16xf32> to vector<32xf32>
    %158 = vector.shape_cast %157 : vector<32xf32> to vector<32x1xf32>
    %cst_47 = arith.constant 1.000000e-24 : f32
    %159 = vector.broadcast %cst_47 : f32 to vector<32x1xf32>
    %160 = arith.maximumf %158, %159 : vector<32x1xf32>
    %161 = math.rsqrt %160 : vector<32x1xf32>
    %162 = vector.broadcast %161 : vector<32x1xf32> to vector<32x16xf32>
    %163 = arith.mulf %155, %162 : vector<32x16xf32>
    %164 = vector.extract_strided_slice %2 {offsets = [128, 0], sizes = [16, 4], strides = [1, 1]} : vector<224x52xf32> to vector<16x4xf32>
    %165 = vector.extract_strided_slice %2 {offsets = [144, 0], sizes = [1, 4], strides = [1, 1]} : vector<224x52xf32> to vector<1x4xf32>
    %cst_48 = arith.constant dense<0.000000e+00> : vector<32x4xf32>
    %166 = tpu.matmul %163, %164, %cst_48 {dimension_numbers = #tpu.dot_dimension_numbers<[1], [0], [0], [1], [0, 0, 1, 1], [], []>} : vector<32x16xf32>, vector<16x4xf32>, vector<32x4xf32> -> vector<32x4xf32>
    %167 = vector.extract_strided_slice %166 {offsets = [0, 0], sizes = [16, 4], strides = [1, 1]} : vector<32x4xf32> to vector<16x4xf32>
    %cst_49 = arith.constant dense<0.000000e+00> : vector<16x4xf32>
    %168 = tpu.matmul %6, %167, %cst_49 {dimension_numbers = #tpu.dot_dimension_numbers<[1], [0], [0], [1], [0, 0, 1, 1], [], []>} : vector<16x16xf32>, vector<16x4xf32>, vector<16x4xf32> -> vector<16x4xf32>
    %169 = vector.extract_strided_slice %166 {offsets = [16, 0], sizes = [16, 4], strides = [1, 1]} : vector<32x4xf32> to vector<16x4xf32>
    %cst_50 = arith.constant dense<0.000000e+00> : vector<16x4xf32>
    %170 = tpu.matmul %8, %169, %cst_50 {dimension_numbers = #tpu.dot_dimension_numbers<[1], [0], [0], [1], [0, 0, 1, 1], [], []>} : vector<16x16xf32>, vector<16x4xf32>, vector<16x4xf32> -> vector<16x4xf32>
    %171 = tpu.concatenate %168, %170 in 0 : vector<16x4xf32>, vector<16x4xf32> -> vector<32x4xf32>
    %172 = vector.broadcast %165 : vector<1x4xf32> to vector<32x4xf32>
    %173 = arith.addf %171, %172 : vector<32x4xf32>
    %174 = arith.mulf %173, %173 : vector<32x4xf32>
    %cst_51 = arith.constant dense<0.000000e+00> : vector<32xf32>
    %175 = vector.multi_reduction <add>, %174, %cst_51 [1] : vector<32x4xf32> to vector<32xf32>
    %176 = vector.shape_cast %175 : vector<32xf32> to vector<32x1xf32>
    %cst_52 = arith.constant 1.000000e-24 : f32
    %177 = vector.broadcast %cst_52 : f32 to vector<32x1xf32>
    %178 = arith.maximumf %176, %177 : vector<32x1xf32>
    %179 = math.rsqrt %178 : vector<32x1xf32>
    %180 = vector.broadcast %179 : vector<32x1xf32> to vector<32x4xf32>
    %181 = arith.mulf %173, %180 : vector<32x4xf32>
    %182 = vector.extract_strided_slice %2 {offsets = [152, 0], sizes = [4, 4], strides = [1, 1]} : vector<224x52xf32> to vector<4x4xf32>
    %cst_53 = arith.constant dense<0.000000e+00> : vector<32x4xf32>
    %183 = tpu.matmul %181, %182, %cst_53 {dimension_numbers = #tpu.dot_dimension_numbers<[1], [0], [0], [1], [0, 0, 1, 1], [], []>} : vector<32x4xf32>, vector<4x4xf32>, vector<32x4xf32> -> vector<32x4xf32>
    %184 = vector.extract_strided_slice %2 {offsets = [160, 0], sizes = [1, 4], strides = [1, 1]} : vector<224x52xf32> to vector<1x4xf32>
    %185 = vector.broadcast %184 : vector<1x4xf32> to vector<32x4xf32>
    %186 = arith.addf %183, %185 : vector<32x4xf32>
    %cst_54 = arith.constant dense<0xFF800000> : vector<32xf32>
    %187 = vector.multi_reduction <maximumf>, %186, %cst_54 [1] : vector<32x4xf32> to vector<32xf32>
    %188 = vector.shape_cast %187 : vector<32xf32> to vector<32x1xf32>
    %189 = vector.broadcast %188 : vector<32x1xf32> to vector<32x4xf32>
    %190 = arith.subf %186, %189 : vector<32x4xf32>
    %191 = math.exp %190 : vector<32x4xf32>
    %cst_55 = arith.constant dense<0.000000e+00> : vector<32xf32>
    %192 = vector.multi_reduction <add>, %191, %cst_55 [1] : vector<32x4xf32> to vector<32xf32>
    %193 = vector.shape_cast %192 : vector<32xf32> to vector<32x1xf32>
    %194 = tpu.reciprocal %193 {approx = true} : vector<32x1xf32> -> vector<32x1xf32>
    %195 = vector.broadcast %194 : vector<32x1xf32> to vector<32x4xf32>
    %196 = arith.mulf %191, %195 : vector<32x4xf32>
    %197 = vector.extract_strided_slice %196 {offsets = [0, 0], sizes = [16, 4], strides = [1, 1]} : vector<32x4xf32> to vector<16x4xf32>
    %198 = vector.extract_strided_slice %196 {offsets = [16, 0], sizes = [16, 4], strides = [1, 1]} : vector<32x4xf32> to vector<16x4xf32>
    %cst_56 = arith.constant dense<0.000000e+00> : vector<16x4xf32>
    %199 = tpu.matmul %9, %197, %cst_56 {dimension_numbers = #tpu.dot_dimension_numbers<[1], [0], [0], [1], [0, 0, 1, 1], [], []>} : vector<16x16xf32>, vector<16x4xf32>, vector<16x4xf32> -> vector<16x4xf32>
    %cst_57 = arith.constant dense<0.000000e+00> : vector<4x4xf32>
    %200 = tpu.matmul %197, %199, %cst_57 {dimension_numbers = #tpu.dot_dimension_numbers<[0], [0], [1], [1], [0, 1, 1, 1], [], []>} : vector<16x4xf32>, vector<16x4xf32>, vector<4x4xf32> -> vector<4x4xf32>
    %cst_58 = arith.constant dense<0.000000e+00> : vector<16x4xf32>
    %201 = tpu.matmul %10, %198, %cst_58 {dimension_numbers = #tpu.dot_dimension_numbers<[1], [0], [0], [1], [0, 0, 1, 1], [], []>} : vector<16x16xf32>, vector<16x4xf32>, vector<16x4xf32> -> vector<16x4xf32>
    %cst_59 = arith.constant dense<0.000000e+00> : vector<4x4xf32>
    %202 = tpu.matmul %198, %201, %cst_59 {dimension_numbers = #tpu.dot_dimension_numbers<[0], [0], [1], [1], [0, 1, 1, 1], [], []>} : vector<16x4xf32>, vector<16x4xf32>, vector<4x4xf32> -> vector<4x4xf32>
    %cst_60 = arith.constant dense<0.000000e+00> : vector<4x24xf32>
    %203 = tpu.matmul %197, %119, %cst_60 {dimension_numbers = #tpu.dot_dimension_numbers<[0], [0], [1], [1], [0, 1, 1, 1], [], []>} : vector<16x4xf32>, vector<16x24xf32>, vector<4x24xf32> -> vector<4x24xf32>
    %204 = tpu.concatenate %200, %200 in 0 : vector<4x4xf32>, vector<4x4xf32> -> vector<8x4xf32>
    %205 = tpu.concatenate %202, %202 in 0 : vector<4x4xf32>, vector<4x4xf32> -> vector<8x4xf32>
    %206 = vector.extract_strided_slice %2 {offsets = [48, 0], sizes = [24, 36], strides = [1, 1]} : vector<224x52xf32> to vector<24x36xf32>
    %cst_61 = arith.constant dense<0.000000e+00> : vector<4x36xf32>
    %207 = tpu.matmul %203, %206, %cst_61 {dimension_numbers = #tpu.dot_dimension_numbers<[1], [0], [0], [1], [0, 0, 1, 1], [], []>} : vector<4x24xf32>, vector<24x36xf32>, vector<4x36xf32> -> vector<4x36xf32>
    %cst_62 = arith.constant 0.000000e+00 : f32
    %208 = vector.broadcast %cst_62 : f32 to vector<4x16xf32>
    %209 = vector.extract_strided_slice %207 {offsets = [0, 0], sizes = [4, 16], strides = [1, 1]} : vector<4x36xf32> to vector<4x16xf32>
    %210 = vector.extract_strided_slice %207 {offsets = [0, 32], sizes = [4, 1], strides = [1, 1]} : vector<4x36xf32> to vector<4x1xf32>
    %211 = vector.extract_strided_slice %207 {offsets = [0, 34], sizes = [4, 1], strides = [1, 1]} : vector<4x36xf32> to vector<4x1xf32>
    %212 = tpu.transpose %210, [1, 0] : vector<4x1xf32> -> vector<1x4xf32>
    %213 = vector.broadcast %211 : vector<4x1xf32> to vector<4x4xf32>
    %214 = vector.broadcast %212 : vector<1x4xf32> to vector<4x4xf32>
    %215 = arith.addf %213, %214 : vector<4x4xf32>
    %cst_63 = arith.constant 0.000000e+00 : f32
    %216 = vector.broadcast %cst_63 : f32 to vector<4x4xf32>
    %217 = arith.cmpf ogt, %215, %216 : vector<4x4xf32>
    %cst_64 = arith.constant 2.000000e-01 : f32
    %218 = vector.broadcast %cst_64 : f32 to vector<4x4xf32>
    %219 = arith.mulf %218, %215 : vector<4x4xf32>
    %220 = arith.select %217, %215, %219 : vector<4x4xi1>, vector<4x4xf32>
    %221 = tpu.concatenate %209, %208 in 1 : vector<4x16xf32>, vector<4x16xf32> -> vector<4x32xf32>
    %222 = vector.extract_strided_slice %207 {offsets = [0, 16], sizes = [4, 16], strides = [1, 1]} : vector<4x36xf32> to vector<4x16xf32>
    %223 = vector.extract_strided_slice %207 {offsets = [0, 33], sizes = [4, 1], strides = [1, 1]} : vector<4x36xf32> to vector<4x1xf32>
    %224 = vector.extract_strided_slice %207 {offsets = [0, 35], sizes = [4, 1], strides = [1, 1]} : vector<4x36xf32> to vector<4x1xf32>
    %225 = tpu.transpose %223, [1, 0] : vector<4x1xf32> -> vector<1x4xf32>
    %226 = vector.broadcast %224 : vector<4x1xf32> to vector<4x4xf32>
    %227 = vector.broadcast %225 : vector<1x4xf32> to vector<4x4xf32>
    %228 = arith.addf %226, %227 : vector<4x4xf32>
    %cst_65 = arith.constant 0.000000e+00 : f32
    %229 = vector.broadcast %cst_65 : f32 to vector<4x4xf32>
    %230 = arith.cmpf ogt, %228, %229 : vector<4x4xf32>
    %cst_66 = arith.constant 2.000000e-01 : f32
    %231 = vector.broadcast %cst_66 : f32 to vector<4x4xf32>
    %232 = arith.mulf %231, %228 : vector<4x4xf32>
    %233 = arith.select %230, %228, %232 : vector<4x4xi1>, vector<4x4xf32>
    %234 = tpu.concatenate %208, %222 in 1 : vector<4x16xf32>, vector<4x16xf32> -> vector<4x32xf32>
    %235 = tpu.concatenate %220, %233 in 0 : vector<4x4xf32>, vector<4x4xf32> -> vector<8x4xf32>
    %236 = tpu.concatenate %221, %234 in 0 : vector<4x32xf32>, vector<4x32xf32> -> vector<8x32xf32>
    %cst_67 = arith.constant 0.000000e+00 : f32
    %237 = vector.broadcast %cst_67 : f32 to vector<8x4xf32>
    %238 = arith.cmpf ogt, %204, %237 : vector<8x4xf32>
    %cst_68 = arith.constant -9.000000e+15 : f32
    %239 = vector.broadcast %cst_68 : f32 to vector<8x4xf32>
    %240 = arith.select %238, %235, %239 : vector<8x4xi1>, vector<8x4xf32>
    %cst_69 = arith.constant dense<0xFF800000> : vector<8xf32>
    %241 = vector.multi_reduction <maximumf>, %240, %cst_69 [1] : vector<8x4xf32> to vector<8xf32>
    %242 = vector.shape_cast %241 : vector<8xf32> to vector<8x1xf32>
    %243 = vector.broadcast %242 : vector<8x1xf32> to vector<8x4xf32>
    %244 = arith.subf %240, %243 : vector<8x4xf32>
    %245 = math.exp %244 : vector<8x4xf32>
    %cst_70 = arith.constant dense<0.000000e+00> : vector<8xf32>
    %246 = vector.multi_reduction <add>, %245, %cst_70 [1] : vector<8x4xf32> to vector<8xf32>
    %247 = vector.shape_cast %246 : vector<8xf32> to vector<8x1xf32>
    %248 = tpu.reciprocal %247 {approx = true} : vector<8x1xf32> -> vector<8x1xf32>
    %249 = vector.broadcast %248 : vector<8x1xf32> to vector<8x4xf32>
    %250 = arith.mulf %245, %249 : vector<8x4xf32>
    %cst_71 = arith.constant dense<0.000000e+00> : vector<4x32xf32>
    %251 = tpu.matmul %250, %236, %cst_71 {dimension_numbers = #tpu.dot_dimension_numbers<[0], [0], [1], [1], [0, 1, 1, 1], [], []>} : vector<8x4xf32>, vector<8x32xf32>, vector<4x32xf32> -> vector<4x32xf32>
    %cst_72 = arith.constant 0.000000e+00 : f32
    %252 = vector.broadcast %cst_72 : f32 to vector<4x32xf32>
    %253 = arith.cmpf ogt, %251, %252 : vector<4x32xf32>
    %cst_73 = arith.constant 0.000000e+00 : f32
    %254 = vector.broadcast %cst_73 : f32 to vector<4x32xf32>
    %255 = arith.minimumf %251, %254 : vector<4x32xf32>
    %256 = math.exp %255 : vector<4x32xf32>
    %cst_74 = arith.constant 1.000000e+00 : f32
    %257 = vector.broadcast %cst_74 : f32 to vector<4x32xf32>
    %258 = arith.subf %256, %257 : vector<4x32xf32>
    %259 = arith.select %253, %251, %258 : vector<4x32xi1>, vector<4x32xf32>
    %260 = vector.extract_strided_slice %2 {offsets = [72, 0], sizes = [32, 52], strides = [1, 1]} : vector<224x52xf32> to vector<32x52xf32>
    %cst_75 = arith.constant dense<0.000000e+00> : vector<4x52xf32>
    %261 = tpu.matmul %259, %260, %cst_75 {dimension_numbers = #tpu.dot_dimension_numbers<[1], [0], [0], [1], [0, 0, 1, 1], [], []>} : vector<4x32xf32>, vector<32x52xf32>, vector<4x52xf32> -> vector<4x52xf32>
    %262 = vector.extract_strided_slice %261 {offsets = [0, 0], sizes = [4, 24], strides = [1, 1]} : vector<4x52xf32> to vector<4x24xf32>
    %263 = vector.extract_strided_slice %261 {offsets = [0, 48], sizes = [4, 1], strides = [1, 1]} : vector<4x52xf32> to vector<4x1xf32>
    %264 = vector.extract_strided_slice %261 {offsets = [0, 50], sizes = [4, 1], strides = [1, 1]} : vector<4x52xf32> to vector<4x1xf32>
    %265 = tpu.transpose %263, [1, 0] : vector<4x1xf32> -> vector<1x4xf32>
    %266 = vector.broadcast %264 : vector<4x1xf32> to vector<4x4xf32>
    %267 = vector.broadcast %265 : vector<1x4xf32> to vector<4x4xf32>
    %268 = arith.addf %266, %267 : vector<4x4xf32>
    %cst_76 = arith.constant 0.000000e+00 : f32
    %269 = vector.broadcast %cst_76 : f32 to vector<4x4xf32>
    %270 = arith.cmpf ogt, %268, %269 : vector<4x4xf32>
    %cst_77 = arith.constant 2.000000e-01 : f32
    %271 = vector.broadcast %cst_77 : f32 to vector<4x4xf32>
    %272 = arith.mulf %271, %268 : vector<4x4xf32>
    %273 = arith.select %270, %268, %272 : vector<4x4xi1>, vector<4x4xf32>
    %274 = vector.extract_strided_slice %261 {offsets = [0, 24], sizes = [4, 24], strides = [1, 1]} : vector<4x52xf32> to vector<4x24xf32>
    %275 = vector.extract_strided_slice %261 {offsets = [0, 49], sizes = [4, 1], strides = [1, 1]} : vector<4x52xf32> to vector<4x1xf32>
    %276 = vector.extract_strided_slice %261 {offsets = [0, 51], sizes = [4, 1], strides = [1, 1]} : vector<4x52xf32> to vector<4x1xf32>
    %277 = tpu.transpose %275, [1, 0] : vector<4x1xf32> -> vector<1x4xf32>
    %278 = vector.broadcast %276 : vector<4x1xf32> to vector<4x4xf32>
    %279 = vector.broadcast %277 : vector<1x4xf32> to vector<4x4xf32>
    %280 = arith.addf %278, %279 : vector<4x4xf32>
    %cst_78 = arith.constant 0.000000e+00 : f32
    %281 = vector.broadcast %cst_78 : f32 to vector<4x4xf32>
    %282 = arith.cmpf ogt, %280, %281 : vector<4x4xf32>
    %cst_79 = arith.constant 2.000000e-01 : f32
    %283 = vector.broadcast %cst_79 : f32 to vector<4x4xf32>
    %284 = arith.mulf %283, %280 : vector<4x4xf32>
    %285 = arith.select %282, %280, %284 : vector<4x4xi1>, vector<4x4xf32>
    %286 = tpu.concatenate %273, %285 in 0 : vector<4x4xf32>, vector<4x4xf32> -> vector<8x4xf32>
    %287 = tpu.concatenate %262, %274 in 0 : vector<4x24xf32>, vector<4x24xf32> -> vector<8x24xf32>
    %cst_80 = arith.constant 0.000000e+00 : f32
    %288 = vector.broadcast %cst_80 : f32 to vector<8x4xf32>
    %289 = arith.cmpf ogt, %204, %288 : vector<8x4xf32>
    %cst_81 = arith.constant -9.000000e+15 : f32
    %290 = vector.broadcast %cst_81 : f32 to vector<8x4xf32>
    %291 = arith.select %289, %286, %290 : vector<8x4xi1>, vector<8x4xf32>
    %cst_82 = arith.constant dense<0xFF800000> : vector<8xf32>
    %292 = vector.multi_reduction <maximumf>, %291, %cst_82 [1] : vector<8x4xf32> to vector<8xf32>
    %293 = vector.shape_cast %292 : vector<8xf32> to vector<8x1xf32>
    %294 = vector.broadcast %293 : vector<8x1xf32> to vector<8x4xf32>
    %295 = arith.subf %291, %294 : vector<8x4xf32>
    %296 = math.exp %295 : vector<8x4xf32>
    %cst_83 = arith.constant dense<0.000000e+00> : vector<8xf32>
    %297 = vector.multi_reduction <add>, %296, %cst_83 [1] : vector<8x4xf32> to vector<8xf32>
    %298 = vector.shape_cast %297 : vector<8xf32> to vector<8x1xf32>
    %299 = tpu.reciprocal %298 {approx = true} : vector<8x1xf32> -> vector<8x1xf32>
    %300 = vector.broadcast %299 : vector<8x1xf32> to vector<8x4xf32>
    %301 = arith.mulf %296, %300 : vector<8x4xf32>
    %cst_84 = arith.constant dense<0.000000e+00> : vector<4x24xf32>
    %302 = tpu.matmul %301, %287, %cst_84 {dimension_numbers = #tpu.dot_dimension_numbers<[0], [0], [1], [1], [0, 1, 1, 1], [], []>} : vector<8x4xf32>, vector<8x24xf32>, vector<4x24xf32> -> vector<4x24xf32>
    %cst_85 = arith.constant 5.000000e-01 : f32
    %303 = vector.broadcast %cst_85 : f32 to vector<4x24xf32>
    %304 = arith.mulf %302, %303 : vector<4x24xf32>
    %cst_86 = arith.constant 0.000000e+00 : f32
    %305 = vector.broadcast %cst_86 : f32 to vector<4x24xf32>
    %306 = arith.cmpf ogt, %304, %305 : vector<4x24xf32>
    %cst_87 = arith.constant 0.000000e+00 : f32
    %307 = vector.broadcast %cst_87 : f32 to vector<4x24xf32>
    %308 = arith.minimumf %304, %307 : vector<4x24xf32>
    %309 = math.exp %308 : vector<4x24xf32>
    %cst_88 = arith.constant 1.000000e+00 : f32
    %310 = vector.broadcast %cst_88 : f32 to vector<4x24xf32>
    %311 = arith.subf %309, %310 : vector<4x24xf32>
    %312 = arith.select %306, %304, %311 : vector<4x24xi1>, vector<4x24xf32>
    %cst_89 = arith.constant 0.000000e+00 : f32
    %313 = vector.broadcast %cst_89 : f32 to vector<8x4xf32>
    %314 = arith.cmpf ogt, %205, %313 : vector<8x4xf32>
    %cst_90 = arith.constant -9.000000e+15 : f32
    %315 = vector.broadcast %cst_90 : f32 to vector<8x4xf32>
    %316 = arith.select %314, %286, %315 : vector<8x4xi1>, vector<8x4xf32>
    %cst_91 = arith.constant dense<0xFF800000> : vector<8xf32>
    %317 = vector.multi_reduction <maximumf>, %316, %cst_91 [1] : vector<8x4xf32> to vector<8xf32>
    %318 = vector.shape_cast %317 : vector<8xf32> to vector<8x1xf32>
    %319 = vector.broadcast %318 : vector<8x1xf32> to vector<8x4xf32>
    %320 = arith.subf %316, %319 : vector<8x4xf32>
    %321 = math.exp %320 : vector<8x4xf32>
    %cst_92 = arith.constant dense<0.000000e+00> : vector<8xf32>
    %322 = vector.multi_reduction <add>, %321, %cst_92 [1] : vector<8x4xf32> to vector<8xf32>
    %323 = vector.shape_cast %322 : vector<8xf32> to vector<8x1xf32>
    %324 = tpu.reciprocal %323 {approx = true} : vector<8x1xf32> -> vector<8x1xf32>
    %325 = vector.broadcast %324 : vector<8x1xf32> to vector<8x4xf32>
    %326 = arith.mulf %321, %325 : vector<8x4xf32>
    %cst_93 = arith.constant dense<0.000000e+00> : vector<4x24xf32>
    %327 = tpu.matmul %326, %287, %cst_93 {dimension_numbers = #tpu.dot_dimension_numbers<[0], [0], [1], [1], [0, 1, 1, 1], [], []>} : vector<8x4xf32>, vector<8x24xf32>, vector<4x24xf32> -> vector<4x24xf32>
    %cst_94 = arith.constant 5.000000e-01 : f32
    %328 = vector.broadcast %cst_94 : f32 to vector<4x24xf32>
    %329 = arith.mulf %327, %328 : vector<4x24xf32>
    %cst_95 = arith.constant 0.000000e+00 : f32
    %330 = vector.broadcast %cst_95 : f32 to vector<4x24xf32>
    %331 = arith.cmpf ogt, %329, %330 : vector<4x24xf32>
    %cst_96 = arith.constant 0.000000e+00 : f32
    %332 = vector.broadcast %cst_96 : f32 to vector<4x24xf32>
    %333 = arith.minimumf %329, %332 : vector<4x24xf32>
    %334 = math.exp %333 : vector<4x24xf32>
    %cst_97 = arith.constant 1.000000e+00 : f32
    %335 = vector.broadcast %cst_97 : f32 to vector<4x24xf32>
    %336 = arith.subf %334, %335 : vector<4x24xf32>
    %337 = arith.select %331, %329, %336 : vector<4x24xi1>, vector<4x24xf32>
    %cst_98 = arith.constant dense<0xFF800000> : vector<24xf32>
    %338 = vector.multi_reduction <maximumf>, %119, %cst_98 [0] : vector<16x24xf32> to vector<24xf32>
    %339 = vector.shape_cast %338 : vector<24xf32> to vector<1x24xf32>
    %cst_99 = arith.constant dense<0xFF800000> : vector<24xf32>
    %340 = vector.multi_reduction <maximumf>, %312, %cst_99 [0] : vector<4x24xf32> to vector<24xf32>
    %341 = vector.shape_cast %340 : vector<24xf32> to vector<1x24xf32>
    %342 = tpu.concatenate %339, %341 in 1 : vector<1x24xf32>, vector<1x24xf32> -> vector<1x48xf32>
    %cst_100 = arith.constant dense<0xFF800000> : vector<24xf32>
    %343 = vector.multi_reduction <maximumf>, %144, %cst_100 [0] : vector<16x24xf32> to vector<24xf32>
    %344 = vector.shape_cast %343 : vector<24xf32> to vector<1x24xf32>
    %cst_101 = arith.constant dense<0xFF800000> : vector<24xf32>
    %345 = vector.multi_reduction <maximumf>, %337, %cst_101 [0] : vector<4x24xf32> to vector<24xf32>
    %346 = vector.shape_cast %345 : vector<24xf32> to vector<1x24xf32>
    %347 = tpu.concatenate %344, %346 in 1 : vector<1x24xf32>, vector<1x24xf32> -> vector<1x48xf32>
    %348 = tpu.concatenate %342, %347 in 0 : vector<1x48xf32>, vector<1x48xf32> -> vector<2x48xf32>
    %349 = vector.extract_strided_slice %2 {offsets = [168, 0], sizes = [48, 24], strides = [1, 1]} : vector<224x52xf32> to vector<48x24xf32>
    %cst_102 = arith.constant dense<0.000000e+00> : vector<2x24xf32>
    %350 = tpu.matmul %348, %349, %cst_102 {dimension_numbers = #tpu.dot_dimension_numbers<[1], [0], [0], [1], [0, 0, 1, 1], [], []>} : vector<2x48xf32>, vector<48x24xf32>, vector<2x24xf32> -> vector<2x24xf32>
    %351 = vector.extract_strided_slice %2 {offsets = [216, 0], sizes = [1, 24], strides = [1, 1]} : vector<224x52xf32> to vector<1x24xf32>
    %352 = vector.broadcast %351 : vector<1x24xf32> to vector<2x24xf32>
    %353 = arith.addf %350, %352 : vector<2x24xf32>
    %c0_103 = arith.constant 0 : index
    %c0_104 = arith.constant 0 : index
    %354 = vector.load %arg3[%c0_103, %c0_104] : memref<2x24xf32, #tpu.memory_space<vmem>>, vector<2x24xf32>
    tpu.vector_store %arg3[%c0_103, %c0_104], %353 {strides = array<i32>} : memref<2x24xf32, #tpu.memory_space<vmem>>, vector<2x24xf32>,
    return
  }
}

</mosaic_0001>

<llo_original>
// kernel: soft_pooling_dgat_forward.1
$region0: #{soft_pooling_dgat_forward.1}
  #allocation0 [shape = 'u32[]', space=smem, size = 0x4, offset = 0x4, fixed_abs, tag = 'smem constant byte address 0x4 - core index']
  #allocation1 [shape = 'u32[72,128]{1,0:T(1,128)}', space=vmem, size = 0x9000, scoped, tag = 'internal scratch']
  %s0 = inlined_call_operand.vmem [shape: f32[2,16,12], index: 0, kind: input, shape index: {}]
  %s1 = inlined_call_operand.vmem [shape: f32[2,16,16], index: 1, kind: input, shape index: {}]
  %s2 = inlined_call_operand.vmem [shape: f32[224,52], index: 2, kind: input, shape index: {}]
  %s3 = inlined_call_operand.hbm [shape: f32[2,24], index: 3, kind: output, shape index: {}]
  %s4 = sld [smem:[#allocation0]]
  $region22: #{soft_pooling_dgat_forward.1} parent=0
    _
  %s6 = ssub.s32 1, %s4
  %s7 = scalar_select 0, %s6, %s4
  $region1: #{soft_pooling_dgat_forward.1} parent=0
    #allocation2 [shape = 'u8[1024]{0}', space=vmem, size = 0x400, scoped, tag = 'output window, operand 0, single buffered']
    #allocation3 [shape = 's32[1]{0}', space=sflag, size = 0x4, scoped, tag = 'scoped memory for soft_pooling_dgat_forward.1']
    %8 = vsyncpa [#allocation3], 0
    // Predicated region
    $region2: #{soft_pooling_dgat_forward.1} parent=1 // pred_check
      _
    $region3: #{soft_pooling_dgat_forward.1} parent=1 // pred_check_branch
      %10 = sbr.rel (0) target = $region5
    $region4: #{soft_pooling_dgat_forward.1} parent=1 // pred_region
      _
    $region5: #{soft_pooling_dgat_forward.1} parent=1 // pred_fallthru
      _
    // Predicated region
    $region6: #{soft_pooling_dgat_forward.1} parent=1 // pred_check
      _
    $region7: #{soft_pooling_dgat_forward.1} parent=1 // pred_check_branch
      %12 = sbr.rel (0) target = $region9
    $region8: #{soft_pooling_dgat_forward.1} parent=1 // pred_region
      _
    $region9: #{soft_pooling_dgat_forward.1} parent=1 // pred_fallthru
      _
    // Predicated region
    $region10: #{soft_pooling_dgat_forward.1} parent=1 // pred_check
      _
    $region11: #{soft_pooling_dgat_forward.1} parent=1 // pred_check_branch
      %14 = sbr.rel (0) target = $region13
    $region12: #{soft_pooling_dgat_forward.1} parent=1 // pred_region
      _
    $region13: #{soft_pooling_dgat_forward.1} parent=1 // pred_fallthru
      _
    %v15 = vld [vmem:[%s0] sm:$0xff]
    %v16 = vld [vmem:[%s0 + $0x8] sm:$0xff]
    %v17 = vld [vmem:[%s0 + $0x10] sm:$0xff]
    %v18 = vld [vmem:[%s0 + $0x18] sm:$0xff]
    %v19 = vld [vmem:[%s1] sm:$0xff]
    %v20 = vld [vmem:[%s1 + $0x8] sm:$0xff]
    %v21 = vld [vmem:[%s1 + $0x10] sm:$0xff]
    %v22 = vld [vmem:[%s1 + $0x18] sm:$0xff]
    %v23 = vld [vmem:[%s2] sm:$0xff]
    %v24 = vld [vmem:[%s2 + $0x8] sm:$0xff]
    %v25 = vld [vmem:[%s2 + $0x10] sm:$0xff]
    %v26 = vld [vmem:[%s2 + $0x18] sm:$0xff]
    %v27 = vld [vmem:[%s2 + $0x20] sm:$0xff]
    %v28 = vld [vmem:[%s2 + $0x28] sm:$0xff]
    %v29 = vld [vmem:[%s2 + $0x30] sm:$0xff]
    %v30 = vld [vmem:[%s2 + $0x38] sm:$0xff]
    %v31 = vld [vmem:[%s2 + $0x40] sm:$0xff]
    %v32 = vld [vmem:[%s2 + $0x48] sm:$0xff]
    %v33 = vld [vmem:[%s2 + $0x50] sm:$0xff]
    %v34 = vld [vmem:[%s2 + $0x58] sm:$0xff]
    %v35 = vld [vmem:[%s2 + $0x60] sm:$0xff]
    %v36 = vld [vmem:[%s2 + $0x68] sm:$0xff]
    %v37 = vld [vmem:[%s2 + $0x70] sm:$0xff]
    %v38 = vld [vmem:[%s2 + $0x78] sm:$0xff]
    %v39 = vld [vmem:[%s2 + $0x80] sm:$0xff]
    %v40 = vld [vmem:[%s2 + $0x88] sm:$0xff]
    %v41 = vld [vmem:[%s2 + $0x90] sm:$0xff]
    %v42 = vld [vmem:[%s2 + $0x98] sm:$0xff]
    %v43 = vld [vmem:[%s2 + $0xa0] sm:$0xff]
    %v44 = vld [vmem:[%s2 + $0xa8] sm:$0xff]
    %v45 = vld [vmem:[%s2 + $0xb0] sm:$0xff]
    %v46 = vld [vmem:[%s2 + $0xb8] sm:$0xff]
    %v47 = vld [vmem:[%s2 + $0xc0] sm:$0xff]
    %v48 = vld [vmem:[%s2 + $0xc8] sm:$0xff]
    %v49 = vld [vmem:[%s2 + $0xd0] sm:$0xff]
    %v50 = vld [vmem:[%s2 + $0xd8] sm:$0xff]
    %51 = vxpose.xlu0.b32.start [1/16] %v19, 128
    %52 = vxpose.xlu0.b32.cont [2/16] %v20, 128
    %53 = vxpose.xlu0.b32.cont [3/16] 0.0, 128
    %54 = vxpose.xlu0.b32.cont [4/16] 0.0, 128
    %55 = vxpose.xlu0.b32.cont [5/16] 0.0, 128
    %56 = vxpose.xlu0.b32.cont [6/16] 0.0, 128
    %57 = vxpose.xlu0.b32.cont [7/16] 0.0, 128
    %58 = vxpose.xlu0.b32.cont [8/16] 0.0, 128
    %59 = vxpose.xlu0.b32.cont [9/16] 0.0, 128
    %60 = vxpose.xlu0.b32.cont [10/16] 0.0, 128
    %61 = vxpose.xlu0.b32.cont [11/16] 0.0, 128
    %62 = vxpose.xlu0.b32.cont [12/16] 0.0, 128
    %63 = vxpose.xlu0.b32.cont [13/16] 0.0, 128
    %64 = vxpose.xlu0.b32.cont [14/16] 0.0, 128
    %65 = vxpose.xlu0.b32.cont [15/16] 0.0, 128
    %66 = vxpose.xlu0.b32.end [16/16] 0.0, 128
    %v67 = vpop.trf.xlu0
    %v68 = vpop.trf.xlu0
    %v69 = vpop.trf.xlu0
    %v70 = vpop.trf.xlu0
    %v71 = vpop.trf.xlu0
    %v72 = vpop.trf.xlu0
    %v73 = vpop.trf.xlu0
    %v74 = vpop.trf.xlu0
    %v75 = vpop.trf.xlu0
    %v76 = vpop.trf.xlu0
    %v77 = vpop.trf.xlu0
    %v78 = vpop.trf.xlu0
    %v79 = vpop.trf.xlu0
    %v80 = vpop.trf.xlu0
    %v81 = vpop.trf.xlu0
    %v82 = vpop.trf.xlu0
    %83 = vxpose.xlu0.b32.start [1/16] %v21, 128
    %84 = vxpose.xlu0.b32.cont [2/16] %v22, 128
    %85 = vxpose.xlu0.b32.cont [3/16] 0.0, 128
    %86 = vxpose.xlu0.b32.cont [4/16] 0.0, 128
    %87 = vxpose.xlu0.b32.cont [5/16] 0.0, 128
    %88 = vxpose.xlu0.b32.cont [6/16] 0.0, 128
    %89 = vxpose.xlu0.b32.cont [7/16] 0.0, 128
    %90 = vxpose.xlu0.b32.cont [8/16] 0.0, 128
    %91 = vxpose.xlu0.b32.cont [9/16] 0.0, 128
    %92 = vxpose.xlu0.b32.cont [10/16] 0.0, 128
    %93 = vxpose.xlu0.b32.cont [11/16] 0.0, 128
    %94 = vxpose.xlu0.b32.cont [12/16] 0.0, 128
    %95 = vxpose.xlu0.b32.cont [13/16] 0.0, 128
    %96 = vxpose.xlu0.b32.cont [14/16] 0.0, 128
    %97 = vxpose.xlu0.b32.cont [15/16] 0.0, 128
    %98 = vxpose.xlu0.b32.end [16/16] 0.0, 128
    %v99 = vpop.trf.xlu0
    %v100 = vpop.trf.xlu0
    %v101 = vpop.trf.xlu0
    %v102 = vpop.trf.xlu0
    %v103 = vpop.trf.xlu0
    %v104 = vpop.trf.xlu0
    %v105 = vpop.trf.xlu0
    %v106 = vpop.trf.xlu0
    %v107 = vpop.trf.xlu0
    %v108 = vpop.trf.xlu0
    %v109 = vpop.trf.xlu0
    %v110 = vpop.trf.xlu0
    %v111 = vpop.trf.xlu0
    %v112 = vpop.trf.xlu0
    %v113 = vpop.trf.xlu0
    %v114 = vpop.trf.xlu0
    %vm115 = vcmask 97280
    %v117 = vsel %vm115, %v15, 0
    %v120 = vsel %vm115, %v16, 0
    %vm122 = vcmask 1043456
    %v124 = vsel %vm122, %v24, 0
    %126 = vmatpush.msra.mxu0 0.0
    %127 = vmatpush.msra.mxu0 0.0
    %128 = vmatpush.msra.mxu0 0.0
    %129 = vmatpush.msra.mxu0 0.0
    %130 = vmatpush.msra.mxu0 0.0
    %131 = vmatpush.msra.mxu0 0.0
    %132 = vmatpush.msra.mxu0 0.0
    %133 = vmatpush.msra.mxu0 0.0
    %134 = vmatpush.msra.mxu0 0.0
    %135 = vmatpush.msra.mxu0 0.0
    %136 = vmatpush.msra.mxu0 0.0
    %137 = vmatpush.msra.mxu0 0.0
    %138 = vmatpush.msra.mxu0 0.0
    %139 = vmatpush.msra.mxu0 0.0
    %140 = vmatpush.msra.mxu0 %v124
    %141 = vmatpush.msra.mxu0 %v23
    %142 = vmatmul.f32.gmra.mxu0 %v117
    %v143 = vpop.f32.mrf.mxu0
    %v144 = vadd.f32 0.0, %v143
    %145 = vmatmul.f32.gmra.mxu0 %v120
    %v146 = vpop.f32.mrf.mxu0
    %v147 = vadd.f32 0.0, %v146
    %148 = vdwg.mxu0
    %151 = vrot.lane.b32.xlu0 %v144, 96
    %v152 = vpop.permute.xlu0 %151
    %153 = vrot.lane.b32.xlu0 %v147, 96
    %v154 = vpop.permute.xlu0 %153
    %157 = vxpose.xlu0.b32.start [1/16] %v152, 128
    %158 = vxpose.xlu0.b32.cont [2/16] %v154, 128
    %159 = vxpose.xlu0.b32.cont [3/16] 0.0, 128
    %160 = vxpose.xlu0.b32.cont [4/16] 0.0, 128
    %161 = vxpose.xlu0.b32.cont [5/16] 0.0, 128
    %162 = vxpose.xlu0.b32.cont [6/16] 0.0, 128
    %163 = vxpose.xlu0.b32.cont [7/16] 0.0, 128
    %164 = vxpose.xlu0.b32.cont [8/16] 0.0, 128
    %165 = vxpose.xlu0.b32.cont [9/16] 0.0, 128
    %166 = vxpose.xlu0.b32.cont [10/16] 0.0, 128
    %167 = vxpose.xlu0.b32.cont [11/16] 0.0, 128
    %168 = vxpose.xlu0.b32.cont [12/16] 0.0, 128
    %169 = vxpose.xlu0.b32.cont [13/16] 0.0, 128
    %170 = vxpose.xlu0.b32.cont [14/16] 0.0, 128
    %171 = vxpose.xlu0.b32.cont [15/16] 0.0, 128
    %172 = vxpose.xlu0.b32.end [16/16] 0.0, 128
    %v173 = vpop.trf.xlu0
    %v174 = vpop.trf.xlu0
    %v175 = vpop.trf.xlu0
    %v176 = vpop.trf.xlu0
    %v177 = vpop.trf.xlu0
    %v178 = vpop.trf.xlu0
    %v179 = vpop.trf.xlu0
    %v180 = vpop.trf.xlu0
    %v181 = vpop.trf.xlu0
    %v182 = vpop.trf.xlu0
    %v183 = vpop.trf.xlu0
    %v184 = vpop.trf.xlu0
    %v185 = vpop.trf.xlu0
    %v186 = vpop.trf.xlu0
    %v187 = vpop.trf.xlu0
    %v188 = vpop.trf.xlu0
    %189 = vset.pattern.permute.xlu0 34
    %190 = vperm.xlu0 %189, %v144
    %v191 = vpop.permute.xlu0 %190
    %193 = vset.pattern.permute.xlu0 34
    %194 = vperm.xlu0 %193, %v147
    %v195 = vpop.permute.xlu0 %194
    %v197 = vperm.slane %v173, 0
    %v198 = vadd.f32 %v191, %v197
    %v199 = vadd.f32 %v195, %v197
    %vm200 = vcmp.gt.f32.partialorder %v198, 0.0
    %vm201 = vcmp.gt.f32.partialorder %v199, 0.0
    %v202 = vmul.f32 %v198, 0.2
    %v203 = vmul.f32 %v199, 0.2
    %v204 = vsel %vm200, %v198, %v202
    %v205 = vsel %vm201, %v199, %v203
    %vm206 = vcmask 130048
    %v207 = vsel %vm206, %v144, 0.0
    %v208 = vsel %vm206, %v147, 0.0
    %209 = vrot.lane.b32.xlu0 %v144, 95
    %v210 = vpop.permute.xlu0 %209
    %211 = vrot.lane.b32.xlu0 %v147, 95
    %v212 = vpop.permute.xlu0 %211
    %215 = vxpose.xlu0.b32.start [1/16] %v210, 128
    %216 = vxpose.xlu0.b32.cont [2/16] %v212, 128
    %217 = vxpose.xlu0.b32.cont [3/16] 0.0, 128
    %218 = vxpose.xlu0.b32.cont [4/16] 0.0, 128
    %219 = vxpose.xlu0.b32.cont [5/16] 0.0, 128
    %220 = vxpose.xlu0.b32.cont [6/16] 0.0, 128
    %221 = vxpose.xlu0.b32.cont [7/16] 0.0, 128
    %222 = vxpose.xlu0.b32.cont [8/16] 0.0, 128
    %223 = vxpose.xlu0.b32.cont [9/16] 0.0, 128
    %224 = vxpose.xlu0.b32.cont [10/16] 0.0, 128
    %225 = vxpose.xlu0.b32.cont [11/16] 0.0, 128
    %226 = vxpose.xlu0.b32.cont [12/16] 0.0, 128
    %227 = vxpose.xlu0.b32.cont [13/16] 0.0, 128
    %228 = vxpose.xlu0.b32.cont [14/16] 0.0, 128
    %229 = vxpose.xlu0.b32.cont [15/16] 0.0, 128
    %230 = vxpose.xlu0.b32.end [16/16] 0.0, 128
    %v231 = vpop.trf.xlu0
    %v232 = vpop.trf.xlu0
    %v233 = vpop.trf.xlu0
    %v234 = vpop.trf.xlu0
    %v235 = vpop.trf.xlu0
    %v236 = vpop.trf.xlu0
    %v237 = vpop.trf.xlu0
    %v238 = vpop.trf.xlu0
    %v239 = vpop.trf.xlu0
    %v240 = vpop.trf.xlu0
    %v241 = vpop.trf.xlu0
    %v242 = vpop.trf.xlu0
    %v243 = vpop.trf.xlu0
    %v244 = vpop.trf.xlu0
    %v245 = vpop.trf.xlu0
    %v246 = vpop.trf.xlu0
    %247 = vset.pattern.permute.xlu0 35
    %248 = vperm.xlu0 %247, %v144
    %v249 = vpop.permute.xlu0 %248
    %251 = vset.pattern.permute.xlu0 35
    %252 = vperm.xlu0 %251, %v147
    %v253 = vpop.permute.xlu0 %252
    %v255 = vperm.slane %v231, 0
    %v256 = vadd.f32 %v249, %v255
    %v257 = vadd.f32 %v253, %v255
    %vm258 = vcmp.gt.f32.partialorder %v256, 0.0
    %vm259 = vcmp.gt.f32.partialorder %v257, 0.0
    %v260 = vmul.f32 %v256, 0.2
    %v261 = vmul.f32 %v257, 0.2
    %v262 = vsel %vm258, %v256, %v260
    %v263 = vsel %vm259, %v257, %v261
    %v264 = vsel %vm206, 0.0, %v144
    %v265 = vsel %vm206, 0.0, %v147
    %vm266 = vcmp.gt.f32.partialorder %v67, 0.0
    %vm267 = vcmp.gt.f32.partialorder %v68, 0.0
    %v268 = vsel %vm266, %v204, -9e+15
    %v269 = vsel %vm267, %v205, -9e+15
    %v270 = vsel %vm266, %v262, -9e+15
    %v271 = vsel %vm267, %v263, -9e+15
    %v272 = vsel %vm206, %v268, -inf
    %273 = vmax.xlane.f32.xlu0 %v272
    %v274 = vpop.xlane.xlu0 %273
    %v275 = vsel %vm206, %v269, -inf
    %276 = vmax.xlane.f32.xlu0 %v275
    %v277 = vpop.xlane.xlu0 %276
    %v278 = vsel %vm206, %v270, -inf
    %279 = vmax.xlane.f32.xlu0 %v278
    %v280 = vpop.xlane.xlu0 %279
    %v281 = vsel %vm206, %v271, -inf
    %282 = vmax.xlane.f32.xlu0 %v281
    %v283 = vpop.xlane.xlu0 %282
    %v284 = vsub.f32 %v268, %v274
    %v285 = vsub.f32 %v269, %v277
    %v286 = vsub.f32 %v270, %v280
    %v287 = vsub.f32 %v271, %v283
    %v288 = vmul.f32 %v284, 1.442695
    %v289 = vpow.pop %v288
    %v290 = vmul.f32 %v285, 1.442695
    %v291 = vpow.pop %v290
    %v292 = vmul.f32 %v286, 1.442695
    %v293 = vpow.pop %v292
    %v294 = vmul.f32 %v287, 1.442695
    %v295 = vpow.pop %v294
    %v296 = vsel %vm206, %v289, 0.0
    %297 = vadd.xlane.f32.xlu0 %v296
    %v298 = vpop.xlane.xlu0 %297
    %v299 = vsel %vm206, %v291, 0.0
    %300 = vadd.xlane.f32.xlu0 %v299
    %v301 = vpop.xlane.xlu0 %300
    %v302 = vsel %vm206, %v293, 0.0
    %303 = vadd.xlane.f32.xlu0 %v302
    %v304 = vpop.xlane.xlu0 %303
    %v305 = vsel %vm206, %v295, 0.0
    %306 = vadd.xlane.f32.xlu0 %v305
    %v307 = vpop.xlane.xlu0 %306
    %v308 = vrcp.pop %v298
    %v309 = vrcp.pop %v301
    %v310 = vrcp.pop %v304
    %v311 = vrcp.pop %v307
    %v312 = vmul.f32 %v289, %v308
    %v313 = vmul.f32 %v291, %v309
    %v314 = vmul.f32 %v293, %v310
    %v315 = vmul.f32 %v295, %v311
    %316 = vxpose.xlu0.b32.start [1/16] %v312, 128
    %317 = vxpose.xlu0.b32.cont [2/16] %v313, 128
    %318 = vxpose.xlu0.b32.cont [3/16] %v314, 128
    %319 = vxpose.xlu0.b32.cont [4/16] %v315, 128
    %320 = vxpose.xlu0.b32.cont [5/16] 0.0, 128
    %321 = vxpose.xlu0.b32.cont [6/16] 0.0, 128
    %322 = vxpose.xlu0.b32.cont [7/16] 0.0, 128
    %323 = vxpose.xlu0.b32.cont [8/16] 0.0, 128
    %324 = vxpose.xlu0.b32.cont [9/16] 0.0, 128
    %325 = vxpose.xlu0.b32.cont [10/16] 0.0, 128
    %326 = vxpose.xlu0.b32.cont [11/16] 0.0, 128
    %327 = vxpose.xlu0.b32.cont [12/16] 0.0, 128
    %328 = vxpose.xlu0.b32.cont [13/16] 0.0, 128
    %329 = vxpose.xlu0.b32.cont [14/16] 0.0, 128
    %330 = vxpose.xlu0.b32.cont [15/16] 0.0, 128
    %331 = vxpose.xlu0.b32.end [16/16] 0.0, 128
    %v332 = vpop.trf.xlu0
    %v333 = vpop.trf.xlu0
    %v334 = vpop.trf.xlu0
    %v335 = vpop.trf.xlu0
    %v336 = vpop.trf.xlu0
    %v337 = vpop.trf.xlu0
    %v338 = vpop.trf.xlu0
    %v339 = vpop.trf.xlu0
    %v340 = vpop.trf.xlu0
    %v341 = vpop.trf.xlu0
    %v342 = vpop.trf.xlu0
    %v343 = vpop.trf.xlu0
    %v344 = vpop.trf.xlu0
    %v345 = vpop.trf.xlu0
    %v346 = vpop.trf.xlu0
    %v347 = vpop.trf.xlu0
    %vm348 = vcmask 261120
    %v350 = vsel %vm348, %v332, 0
    %v353 = vsel %vm348, %v333, 0
    %355 = vmatpush.msra.mxu0 0.0
    %356 = vmatpush.msra.mxu0 0.0
    %357 = vmatpush.msra.mxu0 0.0
    %358 = vmatpush.msra.mxu0 0.0
    %359 = vmatpush.msra.mxu0 0.0
    %360 = vmatpush.msra.mxu0 0.0
    %361 = vmatpush.msra.mxu0 0.0
    %362 = vmatpush.msra.mxu0 0.0
    %363 = vmatpush.msra.mxu0 0.0
    %364 = vmatpush.msra.mxu0 0.0
    %365 = vmatpush.msra.mxu0 0.0
    %366 = vmatpush.msra.mxu0 0.0
    %367 = vmatpush.msra.mxu0 %v265
    %368 = vmatpush.msra.mxu0 %v264
    %369 = vmatpush.msra.mxu0 %v208
    %370 = vmatpush.msra.mxu0 %v207
    %371 = vmatmul.f32.gmra.mxu0 %v350
    %v372 = vpop.f32.mrf.mxu0
    %v373 = vadd.f32 0.0, %v372
    %374 = vmatmul.f32.gmra.mxu0 %v353
    %v375 = vpop.f32.mrf.mxu0
    %v376 = vadd.f32 0.0, %v375
    %377 = vdwg.mxu0
    %vm378 = vcmp.gt.f32.partialorder %v373, 0.0
    %vm379 = vcmp.gt.f32.partialorder %v376, 0.0
    %v380 = vmin.f32 %v373, 0.0
    %v381 = vmin.f32 %v376, 0.0
    %v382 = vmul.f32 %v380, 1.442695
    %v383 = vpow.pop %v382
    %v384 = vmul.f32 %v381, 1.442695
    %v385 = vpow.pop %v384
    %v386 = vsub.f32 %v383, 1.0
    %v387 = vsub.f32 %v385, 1.0
    %v388 = vsel %vm378, %v373, %v386
    %v389 = vsel %vm379, %v376, %v387
    %v391 = vsel %vm348, %v388, 0
    %v394 = vsel %vm348, %v389, 0
    %396 = vmatpush.msra.mxu0 0.0
    %397 = vmatpush.msra.mxu0 0.0
    %398 = vmatpush.msra.mxu0 0.0
    %399 = vmatpush.msra.mxu0 0.0
    %400 = vmatpush.msra.mxu0 0.0
    %401 = vmatpush.msra.mxu0 0.0
    %402 = vmatpush.msra.mxu0 0.0
    %403 = vmatpush.msra.mxu0 0.0
    %404 = vmatpush.msra.mxu0 0.0
    %405 = vmatpush.msra.mxu0 0.0
    %406 = vmatpush.msra.mxu0 0.0
    %407 = vmatpush.msra.mxu0 0.0
    %408 = vmatpush.msra.mxu0 %v28
    %409 = vmatpush.msra.mxu0 %v27
    %410 = vmatpush.msra.mxu0 %v26
    %411 = vmatpush.msra.mxu0 %v25
    %412 = vmatmul.f32.gmra.mxu0 %v391
    %v413 = vpop.f32.mrf.mxu0
    %v414 = vadd.f32 0.0, %v413
    %415 = vmatmul.f32.gmra.mxu0 %v394
    %v416 = vpop.f32.mrf.mxu0
    %v417 = vadd.f32 0.0, %v416
    %418 = vdwg.mxu0
    %421 = vrot.lane.b32.xlu0 %v414, 80
    %v422 = vpop.permute.xlu0 %421
    %423 = vrot.lane.b32.xlu0 %v417, 80
    %v424 = vpop.permute.xlu0 %423
    %427 = vxpose.xlu0.b32.start [1/16] %v422, 128
    %428 = vxpose.xlu0.b32.cont [2/16] %v424, 128
    %429 = vxpose.xlu0.b32.cont [3/16] 0.0, 128
    %430 = vxpose.xlu0.b32.cont [4/16] 0.0, 128
    %431 = vxpose.xlu0.b32.cont [5/16] 0.0, 128
    %432 = vxpose.xlu0.b32.cont [6/16] 0.0, 128
    %433 = vxpose.xlu0.b32.cont [7/16] 0.0, 128
    %434 = vxpose.xlu0.b32.cont [8/16] 0.0, 128
    %435 = vxpose.xlu0.b32.cont [9/16] 0.0, 128
    %436 = vxpose.xlu0.b32.cont [10/16] 0.0, 128
    %437 = vxpose.xlu0.b32.cont [11/16] 0.0, 128
    %438 = vxpose.xlu0.b32.cont [12/16] 0.0, 128
    %439 = vxpose.xlu0.b32.cont [13/16] 0.0, 128
    %440 = vxpose.xlu0.b32.cont [14/16] 0.0, 128
    %441 = vxpose.xlu0.b32.cont [15/16] 0.0, 128
    %442 = vxpose.xlu0.b32.end [16/16] 0.0, 128
    %v443 = vpop.trf.xlu0
    %v444 = vpop.trf.xlu0
    %v445 = vpop.trf.xlu0
    %v446 = vpop.trf.xlu0
    %v447 = vpop.trf.xlu0
    %v448 = vpop.trf.xlu0
    %v449 = vpop.trf.xlu0
    %v450 = vpop.trf.xlu0
    %v451 = vpop.trf.xlu0
    %v452 = vpop.trf.xlu0
    %v453 = vpop.trf.xlu0
    %v454 = vpop.trf.xlu0
    %v455 = vpop.trf.xlu0
    %v456 = vpop.trf.xlu0
    %v457 = vpop.trf.xlu0
    %v458 = vpop.trf.xlu0
    %459 = vset.pattern.permute.xlu0 50
    %460 = vperm.xlu0 %459, %v414
    %v461 = vpop.permute.xlu0 %460
    %463 = vset.pattern.permute.xlu0 50
    %464 = vperm.xlu0 %463, %v417
    %v465 = vpop.permute.xlu0 %464
    %v467 = vperm.slane %v443, 0
    %v468 = vadd.f32 %v461, %v467
    %v469 = vadd.f32 %v465, %v467
    %vm470 = vcmp.gt.f32.partialorder %v468, 0.0
    %vm471 = vcmp.gt.f32.partialorder %v469, 0.0
    %v472 = vmul.f32 %v468, 0.2
    %v473 = vmul.f32 %v469, 0.2
    %v474 = vsel %vm470, %v468, %v472
    %v475 = vsel %vm471, %v469, %v473
    %476 = vrot.lane.b32.xlu0 %v414, 79
    %v477 = vpop.permute.xlu0 %476
    %478 = vrot.lane.b32.xlu0 %v417, 79
    %v479 = vpop.permute.xlu0 %478
    %482 = vxpose.xlu0.b32.start [1/16] %v477, 128
    %483 = vxpose.xlu0.b32.cont [2/16] %v479, 128
    %484 = vxpose.xlu0.b32.cont [3/16] 0.0, 128
    %485 = vxpose.xlu0.b32.cont [4/16] 0.0, 128
    %486 = vxpose.xlu0.b32.cont [5/16] 0.0, 128
    %487 = vxpose.xlu0.b32.cont [6/16] 0.0, 128
    %488 = vxpose.xlu0.b32.cont [7/16] 0.0, 128
    %489 = vxpose.xlu0.b32.cont [8/16] 0.0, 128
    %490 = vxpose.xlu0.b32.cont [9/16] 0.0, 128
    %491 = vxpose.xlu0.b32.cont [10/16] 0.0, 128
    %492 = vxpose.xlu0.b32.cont [11/16] 0.0, 128
    %493 = vxpose.xlu0.b32.cont [12/16] 0.0, 128
    %494 = vxpose.xlu0.b32.cont [13/16] 0.0, 128
    %495 = vxpose.xlu0.b32.cont [14/16] 0.0, 128
    %496 = vxpose.xlu0.b32.cont [15/16] 0.0, 128
    %497 = vxpose.xlu0.b32.end [16/16] 0.0, 128
    %v498 = vpop.trf.xlu0
    %v499 = vpop.trf.xlu0
    %v500 = vpop.trf.xlu0
    %v501 = vpop.trf.xlu0
    %v502 = vpop.trf.xlu0
    %v503 = vpop.trf.xlu0
    %v504 = vpop.trf.xlu0
    %v505 = vpop.trf.xlu0
    %v506 = vpop.trf.xlu0
    %v507 = vpop.trf.xlu0
    %v508 = vpop.trf.xlu0
    %v509 = vpop.trf.xlu0
    %v510 = vpop.trf.xlu0
    %v511 = vpop.trf.xlu0
    %v512 = vpop.trf.xlu0
    %v513 = vpop.trf.xlu0
    %514 = vset.pattern.permute.xlu0 51
    %515 = vperm.xlu0 %514, %v414
    %v516 = vpop.permute.xlu0 %515
    %518 = vset.pattern.permute.xlu0 51
    %519 = vperm.xlu0 %518, %v417
    %v520 = vpop.permute.xlu0 %519
    %v522 = vperm.slane %v498, 0
    %v523 = vadd.f32 %v516, %v522
    %v524 = vadd.f32 %v520, %v522
    %vm525 = vcmp.gt.f32.partialorder %v523, 0.0
    %vm526 = vcmp.gt.f32.partialorder %v524, 0.0
    %v527 = vmul.f32 %v523, 0.2
    %v528 = vmul.f32 %v524, 0.2
    %v529 = vsel %vm525, %v523, %v527
    %v530 = vsel %vm526, %v524, %v528
    %531 = vrot.lane.b32.xlu0 %v414, 104
    %v532 = vpop.permute.xlu0 %531
    %533 = vrot.lane.b32.xlu0 %v417, 104
    %v534 = vpop.permute.xlu0 %533
    %v537 = vsel %vm266, %v474, -9e+15
    %v538 = vsel %vm267, %v475, -9e+15
    %v539 = vsel %vm266, %v529, -9e+15
    %v540 = vsel %vm267, %v530, -9e+15
    %v541 = vsel %vm206, %v537, -inf
    %542 = vmax.xlane.f32.xlu0 %v541
    %v543 = vpop.xlane.xlu0 %542
    %v544 = vsel %vm206, %v538, -inf
    %545 = vmax.xlane.f32.xlu0 %v544
    %v546 = vpop.xlane.xlu0 %545
    %v547 = vsel %vm206, %v539, -inf
    %548 = vmax.xlane.f32.xlu0 %v547
    %v549 = vpop.xlane.xlu0 %548
    %v550 = vsel %vm206, %v540, -inf
    %551 = vmax.xlane.f32.xlu0 %v550
    %v552 = vpop.xlane.xlu0 %551
    %v553 = vsub.f32 %v537, %v543
    %v554 = vsub.f32 %v538, %v546
    %v555 = vsub.f32 %v539, %v549
    %v556 = vsub.f32 %v540, %v552
    %v557 = vmul.f32 %v553, 1.442695
    %v558 = vpow.pop %v557
    %v559 = vmul.f32 %v554, 1.442695
    %v560 = vpow.pop %v559
    %v561 = vmul.f32 %v555, 1.442695
    %v562 = vpow.pop %v561
    %v563 = vmul.f32 %v556, 1.442695
    %v564 = vpow.pop %v563
    %v565 = vsel %vm206, %v558, 0.0
    %566 = vadd.xlane.f32.xlu0 %v565
    %v567 = vpop.xlane.xlu0 %566
    %v568 = vsel %vm206, %v560, 0.0
    %569 = vadd.xlane.f32.xlu0 %v568
    %v570 = vpop.xlane.xlu0 %569
    %v571 = vsel %vm206, %v562, 0.0
    %572 = vadd.xlane.f32.xlu0 %v571
    %v573 = vpop.xlane.xlu0 %572
    %v574 = vsel %vm206, %v564, 0.0
    %575 = vadd.xlane.f32.xlu0 %v574
    %v576 = vpop.xlane.xlu0 %575
    %v577 = vrcp.pop %v567
    %v578 = vrcp.pop %v570
    %v579 = vrcp.pop %v573
    %v580 = vrcp.pop %v576
    %v581 = vmul.f32 %v558, %v577
    %v582 = vmul.f32 %v560, %v578
    %v583 = vmul.f32 %v562, %v579
    %v584 = vmul.f32 %v564, %v580
    %585 = vxpose.xlu0.b32.start [1/16] %v581, 128
    %586 = vxpose.xlu0.b32.cont [2/16] %v582, 128
    %587 = vxpose.xlu0.b32.cont [3/16] %v583, 128
    %588 = vxpose.xlu0.b32.cont [4/16] %v584, 128
    %589 = vxpose.xlu0.b32.cont [5/16] 0.0, 128
    %590 = vxpose.xlu0.b32.cont [6/16] 0.0, 128
    %591 = vxpose.xlu0.b32.cont [7/16] 0.0, 128
    %592 = vxpose.xlu0.b32.cont [8/16] 0.0, 128
    %593 = vxpose.xlu0.b32.cont [9/16] 0.0, 128
    %594 = vxpose.xlu0.b32.cont [10/16] 0.0, 128
    %595 = vxpose.xlu0.b32.cont [11/16] 0.0, 128
    %596 = vxpose.xlu0.b32.cont [12/16] 0.0, 128
    %597 = vxpose.xlu0.b32.cont [13/16] 0.0, 128
    %598 = vxpose.xlu0.b32.cont [14/16] 0.0, 128
    %599 = vxpose.xlu0.b32.cont [15/16] 0.0, 128
    %600 = vxpose.xlu0.b32.end [16/16] 0.0, 128
    %v601 = vpop.trf.xlu0
    %v602 = vpop.trf.xlu0
    %v603 = vpop.trf.xlu0
    %v604 = vpop.trf.xlu0
    %v605 = vpop.trf.xlu0
    %v606 = vpop.trf.xlu0
    %v607 = vpop.trf.xlu0
    %v608 = vpop.trf.xlu0
    %v609 = vpop.trf.xlu0
    %v610 = vpop.trf.xlu0
    %v611 = vpop.trf.xlu0
    %v612 = vpop.trf.xlu0
    %v613 = vpop.trf.xlu0
    %v614 = vpop.trf.xlu0
    %v615 = vpop.trf.xlu0
    %v616 = vpop.trf.xlu0
    %v618 = vsel %vm348, %v601, 0
    %v621 = vsel %vm348, %v602, 0
    %623 = vmatpush.msra.mxu0 0.0
    %624 = vmatpush.msra.mxu0 0.0
    %625 = vmatpush.msra.mxu0 0.0
    %626 = vmatpush.msra.mxu0 0.0
    %627 = vmatpush.msra.mxu0 0.0
    %628 = vmatpush.msra.mxu0 0.0
    %629 = vmatpush.msra.mxu0 0.0
    %630 = vmatpush.msra.mxu0 0.0
    %631 = vmatpush.msra.mxu0 0.0
    %632 = vmatpush.msra.mxu0 0.0
    %633 = vmatpush.msra.mxu0 0.0
    %634 = vmatpush.msra.mxu0 0.0
    %635 = vmatpush.msra.mxu0 %v534
    %636 = vmatpush.msra.mxu0 %v532
    %637 = vmatpush.msra.mxu0 %v417
    %638 = vmatpush.msra.mxu0 %v414
    %639 = vmatmul.f32.gmra.mxu0 %v618
    %v640 = vpop.f32.mrf.mxu0
    %v641 = vadd.f32 0.0, %v640
    %642 = vmatmul.f32.gmra.mxu0 %v621
    %v643 = vpop.f32.mrf.mxu0
    %v644 = vadd.f32 0.0, %v643
    %645 = vdwg.mxu0
    %v646 = vmul.f32 %v641, 0.5
    %v647 = vmul.f32 %v644, 0.5
    %vm648 = vcmp.gt.f32.partialorder %v646, 0.0
    %vm649 = vcmp.gt.f32.partialorder %v647, 0.0
    %v650 = vmin.f32 %v646, 0.0
    %v651 = vmin.f32 %v647, 0.0
    %v652 = vmul.f32 %v650, 1.442695
    %v653 = vpow.pop %v652
    %v654 = vmul.f32 %v651, 1.442695
    %v655 = vpow.pop %v654
    %v656 = vsub.f32 %v653, 1.0
    %v657 = vsub.f32 %v655, 1.0
    %v658 = vsel %vm648, %v646, %v656
    %v659 = vsel %vm649, %v647, %v657
    %vm660 = vcmp.gt.f32.partialorder %v99, 0.0
    %vm661 = vcmp.gt.f32.partialorder %v100, 0.0
    %v662 = vsel %vm660, %v474, -9e+15
    %v663 = vsel %vm661, %v475, -9e+15
    %v664 = vsel %vm660, %v529, -9e+15
    %v665 = vsel %vm661, %v530, -9e+15
    %v666 = vsel %vm206, %v662, -inf
    %667 = vmax.xlane.f32.xlu0 %v666
    %v668 = vpop.xlane.xlu0 %667
    %v669 = vsel %vm206, %v663, -inf
    %670 = vmax.xlane.f32.xlu0 %v669
    %v671 = vpop.xlane.xlu0 %670
    %v672 = vsel %vm206, %v664, -inf
    %673 = vmax.xlane.f32.xlu0 %v672
    %v674 = vpop.xlane.xlu0 %673
    %v675 = vsel %vm206, %v665, -inf
    %676 = vmax.xlane.f32.xlu0 %v675
    %v677 = vpop.xlane.xlu0 %676
    %v678 = vsub.f32 %v662, %v668
    %v679 = vsub.f32 %v663, %v671
    %v680 = vsub.f32 %v664, %v674
    %v681 = vsub.f32 %v665, %v677
    %v682 = vmul.f32 %v678, 1.442695
    %v683 = vpow.pop %v682
    %v684 = vmul.f32 %v679, 1.442695
    %v685 = vpow.pop %v684
    %v686 = vmul.f32 %v680, 1.442695
    %v687 = vpow.pop %v686
    %v688 = vmul.f32 %v681, 1.442695
    %v689 = vpow.pop %v688
    %v690 = vsel %vm206, %v683, 0.0
    %691 = vadd.xlane.f32.xlu0 %v690
    %v692 = vpop.xlane.xlu0 %691
    %v693 = vsel %vm206, %v685, 0.0
    %694 = vadd.xlane.f32.xlu0 %v693
    %v695 = vpop.xlane.xlu0 %694
    %v696 = vsel %vm206, %v687, 0.0
    %697 = vadd.xlane.f32.xlu0 %v696
    %v698 = vpop.xlane.xlu0 %697
    %v699 = vsel %vm206, %v689, 0.0
    %700 = vadd.xlane.f32.xlu0 %v699
    %v701 = vpop.xlane.xlu0 %700
    %v702 = vrcp.pop %v692
    %v703 = vrcp.pop %v695
    %v704 = vrcp.pop %v698
    %v705 = vrcp.pop %v701
    %v706 = vmul.f32 %v683, %v702
    %v707 = vmul.f32 %v685, %v703
    %v708 = vmul.f32 %v687, %v704
    %v709 = vmul.f32 %v689, %v705
    %710 = vxpose.xlu0.b32.start [1/16] %v706, 128
    %711 = vxpose.xlu0.b32.cont [2/16] %v707, 128
    %712 = vxpose.xlu0.b32.cont [3/16] %v708, 128
    %713 = vxpose.xlu0.b32.cont [4/16] %v709, 128
    %714 = vxpose.xlu0.b32.cont [5/16] 0.0, 128
    %715 = vxpose.xlu0.b32.cont [6/16] 0.0, 128
    %716 = vxpose.xlu0.b32.cont [7/16] 0.0, 128
    %717 = vxpose.xlu0.b32.cont [8/16] 0.0, 128
    %718 = vxpose.xlu0.b32.cont [9/16] 0.0, 128
    %719 = vxpose.xlu0.b32.cont [10/16] 0.0, 128
    %720 = vxpose.xlu0.b32.cont [11/16] 0.0, 128
    %721 = vxpose.xlu0.b32.cont [12/16] 0.0, 128
    %722 = vxpose.xlu0.b32.cont [13/16] 0.0, 128
    %723 = vxpose.xlu0.b32.cont [14/16] 0.0, 128
    %724 = vxpose.xlu0.b32.cont [15/16] 0.0, 128
    %725 = vxpose.xlu0.b32.end [16/16] 0.0, 128
    %v726 = vpop.trf.xlu0
    %v727 = vpop.trf.xlu0
    %v728 = vpop.trf.xlu0
    %v729 = vpop.trf.xlu0
    %v730 = vpop.trf.xlu0
    %v731 = vpop.trf.xlu0
    %v732 = vpop.trf.xlu0
    %v733 = vpop.trf.xlu0
    %v734 = vpop.trf.xlu0
    %v735 = vpop.trf.xlu0
    %v736 = vpop.trf.xlu0
    %v737 = vpop.trf.xlu0
    %v738 = vpop.trf.xlu0
    %v739 = vpop.trf.xlu0
    %v740 = vpop.trf.xlu0
    %v741 = vpop.trf.xlu0
    %v743 = vsel %vm348, %v726, 0
    %v746 = vsel %vm348, %v727, 0
    %748 = vmatpush.msra.mxu0 0.0
    %749 = vmatpush.msra.mxu0 0.0
    %750 = vmatpush.msra.mxu0 0.0
    %751 = vmatpush.msra.mxu0 0.0
    %752 = vmatpush.msra.mxu0 0.0
    %753 = vmatpush.msra.mxu0 0.0
    %754 = vmatpush.msra.mxu0 0.0
    %755 = vmatpush.msra.mxu0 0.0
    %756 = vmatpush.msra.mxu0 0.0
    %757 = vmatpush.msra.mxu0 0.0
    %758 = vmatpush.msra.mxu0 0.0
    %759 = vmatpush.msra.mxu0 0.0
    %760 = vmatpush.msra.mxu0 %v534
    %761 = vmatpush.msra.mxu0 %v532
    %762 = vmatpush.msra.mxu0 %v417
    %763 = vmatpush.msra.mxu0 %v414
    %764 = vmatmul.f32.gmra.mxu0 %v743
    %v765 = vpop.f32.mrf.mxu0
    %v766 = vadd.f32 0.0, %v765
    %767 = vmatmul.f32.gmra.mxu0 %v746
    %v768 = vpop.f32.mrf.mxu0
    %v769 = vadd.f32 0.0, %v768
    %770 = vdwg.mxu0
    %v771 = vmul.f32 %v766, 0.5
    %v772 = vmul.f32 %v769, 0.5
    %vm773 = vcmp.gt.f32.partialorder %v771, 0.0
    %vm774 = vcmp.gt.f32.partialorder %v772, 0.0
    %v775 = vmin.f32 %v771, 0.0
    %v776 = vmin.f32 %v772, 0.0
    %v777 = vmul.f32 %v775, 1.442695
    %v778 = vpow.pop %v777
    %v779 = vmul.f32 %v776, 1.442695
    %v780 = vpow.pop %v779
    %v781 = vsub.f32 %v778, 1.0
    %v782 = vsub.f32 %v780, 1.0
    %v783 = vsel %vm773, %v771, %v781
    %v784 = vsel %vm774, %v772, %v782
    %v786 = vsel %vm115, %v17, 0
    %v789 = vsel %vm115, %v18, 0
    %v792 = vsel %vm122, %v37, 0
    %794 = vmatpush.msra.mxu0 0.0
    %795 = vmatpush.msra.mxu0 0.0
    %796 = vmatpush.msra.mxu0 0.0
    %797 = vmatpush.msra.mxu0 0.0
    %798 = vmatpush.msra.mxu0 0.0
    %799 = vmatpush.msra.mxu0 0.0
    %800 = vmatpush.msra.mxu0 0.0
    %801 = vmatpush.msra.mxu0 0.0
    %802 = vmatpush.msra.mxu0 0.0
    %803 = vmatpush.msra.mxu0 0.0
    %804 = vmatpush.msra.mxu0 0.0
    %805 = vmatpush.msra.mxu0 0.0
    %806 = vmatpush.msra.mxu0 0.0
    %807 = vmatpush.msra.mxu0 0.0
    %808 = vmatpush.msra.mxu0 %v792
    %809 = vmatpush.msra.mxu0 %v36
    %810 = vmatmul.f32.gmra.mxu0 %v117
    %v811 = vpop.f32.mrf.mxu0
    %v812 = vadd.f32 0.0, %v811
    %813 = vmatmul.f32.gmra.mxu0 %v120
    %v814 = vpop.f32.mrf.mxu0
    %v815 = vadd.f32 0.0, %v814
    %816 = vmatmul.f32.gmra.mxu0 %v786
    %v817 = vpop.f32.mrf.mxu0
    %v818 = vadd.f32 0.0, %v817
    %819 = vmatmul.f32.gmra.mxu0 %v789
    %v820 = vpop.f32.mrf.mxu0
    %v821 = vadd.f32 0.0, %v820
    %822 = vdwg.mxu0
    %v824 = vsel %vm206, %v19, 0
    %v827 = vsel %vm206, %v20, 0
    %829 = vmatpush.msra.mxu0 0.0
    %830 = vmatpush.msra.mxu0 0.0
    %831 = vmatpush.msra.mxu0 0.0
    %832 = vmatpush.msra.mxu0 0.0
    %833 = vmatpush.msra.mxu0 0.0
    %834 = vmatpush.msra.mxu0 0.0
    %835 = vmatpush.msra.mxu0 0.0
    %836 = vmatpush.msra.mxu0 0.0
    %837 = vmatpush.msra.mxu0 0.0
    %838 = vmatpush.msra.mxu0 0.0
    %839 = vmatpush.msra.mxu0 0.0
    %840 = vmatpush.msra.mxu0 0.0
    %841 = vmatpush.msra.mxu0 0.0
    %842 = vmatpush.msra.mxu0 0.0
    %843 = vmatpush.msra.mxu0 %v815
    %844 = vmatpush.msra.mxu0 %v812
    %845 = vmatmul.f32.gmra.mxu0 %v824
    %v846 = vpop.f32.mrf.mxu0
    %v847 = vadd.f32 0.0, %v846
    %848 = vmatmul.f32.gmra.mxu0 %v827
    %v849 = vpop.f32.mrf.mxu0
    %v850 = vadd.f32 0.0, %v849
    %851 = vdwg.mxu0
    %v853 = vsel %vm206, %v21, 0
    %v856 = vsel %vm206, %v22, 0
    %858 = vmatpush.msra.mxu0 0.0
    %859 = vmatpush.msra.mxu0 0.0
    %860 = vmatpush.msra.mxu0 0.0
    %861 = vmatpush.msra.mxu0 0.0
    %862 = vmatpush.msra.mxu0 0.0
    %863 = vmatpush.msra.mxu0 0.0
    %864 = vmatpush.msra.mxu0 0.0
    %865 = vmatpush.msra.mxu0 0.0
    %866 = vmatpush.msra.mxu0 0.0
    %867 = vmatpush.msra.mxu0 0.0
    %868 = vmatpush.msra.mxu0 0.0
    %869 = vmatpush.msra.mxu0 0.0
    %870 = vmatpush.msra.mxu0 0.0
    %871 = vmatpush.msra.mxu0 0.0
    %872 = vmatpush.msra.mxu0 %v821
    %873 = vmatpush.msra.mxu0 %v818
    %874 = vmatmul.f32.gmra.mxu0 %v853
    %v875 = vpop.f32.mrf.mxu0
    %v876 = vadd.f32 0.0, %v875
    %877 = vmatmul.f32.gmra.mxu0 %v856
    %v878 = vpop.f32.mrf.mxu0
    %v879 = vadd.f32 0.0, %v878
    %880 = vdwg.mxu0
    %v881 = vperm.slane %v38, 0
    %v882 = vadd.f32 %v847, %v881
    %v883 = vadd.f32 %v850, %v881
    %v884 = vadd.f32 %v876, %v881
    %v885 = vadd.f32 %v879, %v881
    %v886 = vmul.f32 %v882, %v882
    %v887 = vmul.f32 %v883, %v883
    %v888 = vmul.f32 %v884, %v884
    %v889 = vmul.f32 %v885, %v885
    %v890 = vsel %vm206, %v886, 0.0
    %891 = vadd.xlane.f32.xlu0 %v890
    %v892 = vpop.xlane.xlu0 %891
    %v893 = vsel %vm206, %v887, 0.0
    %894 = vadd.xlane.f32.xlu0 %v893
    %v895 = vpop.xlane.xlu0 %894
    %v896 = vsel %vm206, %v888, 0.0
    %897 = vadd.xlane.f32.xlu0 %v896
    %v898 = vpop.xlane.xlu0 %897
    %v899 = vsel %vm206, %v889, 0.0
    %900 = vadd.xlane.f32.xlu0 %v899
    %v901 = vpop.xlane.xlu0 %900
    %v902 = vmax.f32 %v892, 1e-24
    %v903 = vmax.f32 %v895, 1e-24
    %v904 = vmax.f32 %v898, 1e-24
    %v905 = vmax.f32 %v901, 1e-24
    %v906 = vrsqrt.pop %v902
    %v907 = vmul.f32 %v906, %v902
    %v908 = vmul.f32 %v907, %v906
    %v909 = vmul.f32 0.5, %v908
    %v910 = vsub.f32 1.5, %v909
    %v911 = vmul.f32 %v906, %v910
    %vm912 = vweird.f32 %v902
    %vm913 = vweird.f32 %v906
    %vm914 = vmor %vm912, %vm913
    %v915 = vsel %vm914, %v906, %v911
    %v916 = vrsqrt.pop %v903
    %v917 = vmul.f32 %v916, %v903
    %v918 = vmul.f32 %v917, %v916
    %v919 = vmul.f32 0.5, %v918
    %v920 = vsub.f32 1.5, %v919
    %v921 = vmul.f32 %v916, %v920
    %vm922 = vweird.f32 %v903
    %vm923 = vweird.f32 %v916
    %vm924 = vmor %vm922, %vm923
    %v925 = vsel %vm924, %v916, %v921
    %v926 = vrsqrt.pop %v904
    %v927 = vmul.f32 %v926, %v904
    %v928 = vmul.f32 %v927, %v926
    %v929 = vmul.f32 0.5, %v928
    %v930 = vsub.f32 1.5, %v929
    %v931 = vmul.f32 %v926, %v930
    %vm932 = vweird.f32 %v904
    %vm933 = vweird.f32 %v926
    %vm934 = vmor %vm932, %vm933
    %v935 = vsel %vm934, %v926, %v931
    %v936 = vrsqrt.pop %v905
    %v937 = vmul.f32 %v936, %v905
    %v938 = vmul.f32 %v937, %v936
    %v939 = vmul.f32 0.5, %v938
    %v940 = vsub.f32 1.5, %v939
    %v941 = vmul.f32 %v936, %v940
    %vm942 = vweird.f32 %v905
    %vm943 = vweird.f32 %v936
    %vm944 = vmor %vm942, %vm943
    %v945 = vsel %vm944, %v936, %v941
    %v946 = vmul.f32 %v882, %v915
    %v947 = vmul.f32 %v883, %v925
    %v948 = vmul.f32 %v884, %v935
    %v949 = vmul.f32 %v885, %v945
    %v951 = vsel %vm206, %v946, 0
    %v954 = vsel %vm206, %v947, 0
    %v957 = vsel %vm206, %v948, 0
    %v960 = vsel %vm206, %v949, 0
    %962 = vmatpush.msra.mxu0 0.0
    %963 = vmatpush.msra.mxu0 0.0
    %964 = vmatpush.msra.mxu0 0.0
    %965 = vmatpush.msra.mxu0 0.0
    %966 = vmatpush.msra.mxu0 0.0
    %967 = vmatpush.msra.mxu0 0.0
    %968 = vmatpush.msra.mxu0 0.0
    %969 = vmatpush.msra.mxu0 0.0
    %970 = vmatpush.msra.mxu0 0.0
    %971 = vmatpush.msra.mxu0 0.0
    %972 = vmatpush.msra.mxu0 0.0
    %973 = vmatpush.msra.mxu0 0.0
    %974 = vmatpush.msra.mxu0 0.0
    %975 = vmatpush.msra.mxu0 0.0
    %976 = vmatpush.msra.mxu0 %v40
    %977 = vmatpush.msra.mxu0 %v39
    %978 = vmatmul.f32.gmra.mxu0 %v951
    %v979 = vpop.f32.mrf.mxu0
    %v980 = vadd.f32 0.0, %v979
    %981 = vmatmul.f32.gmra.mxu0 %v954
    %v982 = vpop.f32.mrf.mxu0
    %v983 = vadd.f32 0.0, %v982
    %984 = vmatmul.f32.gmra.mxu0 %v957
    %v985 = vpop.f32.mrf.mxu0
    %v986 = vadd.f32 0.0, %v985
    %987 = vmatmul.f32.gmra.mxu0 %v960
    %v988 = vpop.f32.mrf.mxu0
    %v989 = vadd.f32 0.0, %v988
    %990 = vdwg.mxu0
    %991 = vmatpush.msra.mxu0 0.0
    %992 = vmatpush.msra.mxu0 0.0
    %993 = vmatpush.msra.mxu0 0.0
    %994 = vmatpush.msra.mxu0 0.0
    %995 = vmatpush.msra.mxu0 0.0
    %996 = vmatpush.msra.mxu0 0.0
    %997 = vmatpush.msra.mxu0 0.0
    %998 = vmatpush.msra.mxu0 0.0
    %999 = vmatpush.msra.mxu0 0.0
    %1000 = vmatpush.msra.mxu0 0.0
    %1001 = vmatpush.msra.mxu0 0.0
    %1002 = vmatpush.msra.mxu0 0.0
    %1003 = vmatpush.msra.mxu0 0.0
    %1004 = vmatpush.msra.mxu0 0.0
    %1005 = vmatpush.msra.mxu0 %v983
    %1006 = vmatpush.msra.mxu0 %v980
    %1007 = vmatmul.f32.gmra.mxu0 %v824
    %v1008 = vpop.f32.mrf.mxu0
    %v1009 = vadd.f32 0.0, %v1008
    %1010 = vmatmul.f32.gmra.mxu0 %v827
    %v1011 = vpop.f32.mrf.mxu0
    %v1012 = vadd.f32 0.0, %v1011
    %1013 = vdwg.mxu0
    %1014 = vmatpush.msra.mxu0 0.0
    %1015 = vmatpush.msra.mxu0 0.0
    %1016 = vmatpush.msra.mxu0 0.0
    %1017 = vmatpush.msra.mxu0 0.0
    %1018 = vmatpush.msra.mxu0 0.0
    %1019 = vmatpush.msra.mxu0 0.0
    %1020 = vmatpush.msra.mxu0 0.0
    %1021 = vmatpush.msra.mxu0 0.0
    %1022 = vmatpush.msra.mxu0 0.0
    %1023 = vmatpush.msra.mxu0 0.0
    %1024 = vmatpush.msra.mxu0 0.0
    %1025 = vmatpush.msra.mxu0 0.0
    %1026 = vmatpush.msra.mxu0 0.0
    %1027 = vmatpush.msra.mxu0 0.0
    %1028 = vmatpush.msra.mxu0 %v989
    %1029 = vmatpush.msra.mxu0 %v986
    %1030 = vmatmul.f32.gmra.mxu0 %v853
    %v1031 = vpop.f32.mrf.mxu0
    %v1032 = vadd.f32 0.0, %v1031
    %1033 = vmatmul.f32.gmra.mxu0 %v856
    %v1034 = vpop.f32.mrf.mxu0
    %v1035 = vadd.f32 0.0, %v1034
    %1036 = vdwg.mxu0
    %v1037 = vperm.slane %v41, 0
    %v1038 = vadd.f32 %v1009, %v1037
    %v1039 = vadd.f32 %v1012, %v1037
    %v1040 = vadd.f32 %v1032, %v1037
    %v1041 = vadd.f32 %v1035, %v1037
    %v1042 = vmul.f32 %v1038, %v1038
    %v1043 = vmul.f32 %v1039, %v1039
    %v1044 = vmul.f32 %v1040, %v1040
    %v1045 = vmul.f32 %v1041, %v1041
    %vm1046 = vcmask 31744
    %v1047 = vsel %vm1046, %v1042, 0.0
    %1048 = vadd.xlane.f32.xlu0 %v1047
    %v1049 = vpop.xlane.xlu0 %1048
    %v1050 = vsel %vm1046, %v1043, 0.0
    %1051 = vadd.xlane.f32.xlu0 %v1050
    %v1052 = vpop.xlane.xlu0 %1051
    %v1053 = vsel %vm1046, %v1044, 0.0
    %1054 = vadd.xlane.f32.xlu0 %v1053
    %v1055 = vpop.xlane.xlu0 %1054
    %v1056 = vsel %vm1046, %v1045, 0.0
    %1057 = vadd.xlane.f32.xlu0 %v1056
    %v1058 = vpop.xlane.xlu0 %1057
    %v1059 = vmax.f32 %v1049, 1e-24
    %v1060 = vmax.f32 %v1052, 1e-24
    %v1061 = vmax.f32 %v1055, 1e-24
    %v1062 = vmax.f32 %v1058, 1e-24
    %v1063 = vrsqrt.pop %v1059
    %v1064 = vmul.f32 %v1063, %v1059
    %v1065 = vmul.f32 %v1064, %v1063
    %v1066 = vmul.f32 0.5, %v1065
    %v1067 = vsub.f32 1.5, %v1066
    %v1068 = vmul.f32 %v1063, %v1067
    %vm1069 = vweird.f32 %v1059
    %vm1070 = vweird.f32 %v1063
    %vm1071 = vmor %vm1069, %vm1070
    %v1072 = vsel %vm1071, %v1063, %v1068
    %v1073 = vrsqrt.pop %v1060
    %v1074 = vmul.f32 %v1073, %v1060
    %v1075 = vmul.f32 %v1074, %v1073
    %v1076 = vmul.f32 0.5, %v1075
    %v1077 = vsub.f32 1.5, %v1076
    %v1078 = vmul.f32 %v1073, %v1077
    %vm1079 = vweird.f32 %v1060
    %vm1080 = vweird.f32 %v1073
    %vm1081 = vmor %vm1079, %vm1080
    %v1082 = vsel %vm1081, %v1073, %v1078
    %v1083 = vrsqrt.pop %v1061
    %v1084 = vmul.f32 %v1083, %v1061
    %v1085 = vmul.f32 %v1084, %v1083
    %v1086 = vmul.f32 0.5, %v1085
    %v1087 = vsub.f32 1.5, %v1086
    %v1088 = vmul.f32 %v1083, %v1087
    %vm1089 = vweird.f32 %v1061
    %vm1090 = vweird.f32 %v1083
    %vm1091 = vmor %vm1089, %vm1090
    %v1092 = vsel %vm1091, %v1083, %v1088
    %v1093 = vrsqrt.pop %v1062
    %v1094 = vmul.f32 %v1093, %v1062
    %v1095 = vmul.f32 %v1094, %v1093
    %v1096 = vmul.f32 0.5, %v1095
    %v1097 = vsub.f32 1.5, %v1096
    %v1098 = vmul.f32 %v1093, %v1097
    %vm1099 = vweird.f32 %v1062
    %vm1100 = vweird.f32 %v1093
    %vm1101 = vmor %vm1099, %vm1100
    %v1102 = vsel %vm1101, %v1093, %v1098
    %v1103 = vmul.f32 %v1038, %v1072
    %v1104 = vmul.f32 %v1039, %v1082
    %v1105 = vmul.f32 %v1040, %v1092
    %v1106 = vmul.f32 %v1041, %v1102
    %v1107 = vperm.slane %v43, 0
    %v1109 = vsel %vm1046, %v1103, 0
    %v1112 = vsel %vm1046, %v1104, 0
    %v1115 = vsel %vm1046, %v1105, 0
    %v1118 = vsel %vm1046, %v1106, 0
    %v1121 = vsel %vm122, %v42, 0
    %1123 = vmatpush.msra.mxu0 0.0
    %1124 = vmatpush.msra.mxu0 0.0
    %1125 = vmatpush.msra.mxu0 0.0
    %1126 = vmatpush.msra.mxu0 0.0
    %1127 = vmatpush.msra.mxu0 0.0
    %1128 = vmatpush.msra.mxu0 0.0
    %1129 = vmatpush.msra.mxu0 0.0
    %1130 = vmatpush.msra.mxu0 0.0
    %1131 = vmatpush.msra.mxu0 0.0
    %1132 = vmatpush.msra.mxu0 0.0
    %1133 = vmatpush.msra.mxu0 0.0
    %1134 = vmatpush.msra.mxu0 0.0
    %1135 = vmatpush.msra.mxu0 0.0
    %1136 = vmatpush.msra.mxu0 0.0
    %1137 = vmatpush.msra.mxu0 0.0
    %1138 = vmatpush.msra.mxu0 %v1121
    %1139 = vmatmul.f32.gmra.mxu0 %v1109
    %v1140 = vpop.f32.mrf.mxu0
    %v1141 = vadd.f32 %v1107, %v1140
    %1142 = vmatmul.f32.gmra.mxu0 %v1112
    %v1143 = vpop.f32.mrf.mxu0
    %v1144 = vadd.f32 %v1107, %v1143
    %1145 = vmatmul.f32.gmra.mxu0 %v1115
    %v1146 = vpop.f32.mrf.mxu0
    %v1147 = vadd.f32 %v1107, %v1146
    %1148 = vmatmul.f32.gmra.mxu0 %v1118
    %v1149 = vpop.f32.mrf.mxu0
    %v1150 = vadd.f32 %v1107, %v1149
    %1151 = vdwg.mxu0
    %v1152 = vsel %vm1046, %v1141, -inf
    %1153 = vmax.xlane.f32.xlu0 %v1152
    %v1154 = vpop.xlane.xlu0 %1153
    %v1155 = vsel %vm1046, %v1144, -inf
    %1156 = vmax.xlane.f32.xlu0 %v1155
    %v1157 = vpop.xlane.xlu0 %1156
    %v1158 = vsel %vm1046, %v1147, -inf
    %1159 = vmax.xlane.f32.xlu0 %v1158
    %v1160 = vpop.xlane.xlu0 %1159
    %v1161 = vsel %vm1046, %v1150, -inf
    %1162 = vmax.xlane.f32.xlu0 %v1161
    %v1163 = vpop.xlane.xlu0 %1162
    %v1164 = vsub.f32 %v1141, %v1154
    %v1165 = vsub.f32 %v1144, %v1157
    %v1166 = vsub.f32 %v1147, %v1160
    %v1167 = vsub.f32 %v1150, %v1163
    %v1168 = vmul.f32 %v1164, 1.442695
    %v1169 = vpow.pop %v1168
    %v1170 = vmul.f32 %v1165, 1.442695
    %v1171 = vpow.pop %v1170
    %v1172 = vmul.f32 %v1166, 1.442695
    %v1173 = vpow.pop %v1172
    %v1174 = vmul.f32 %v1167, 1.442695
    %v1175 = vpow.pop %v1174
    %v1176 = vsel %vm1046, %v1169, 0.0
    %1177 = vadd.xlane.f32.xlu0 %v1176
    %v1178 = vpop.xlane.xlu0 %1177
    %v1179 = vsel %vm1046, %v1171, 0.0
    %1180 = vadd.xlane.f32.xlu0 %v1179
    %v1181 = vpop.xlane.xlu0 %1180
    %v1182 = vsel %vm1046, %v1173, 0.0
    %1183 = vadd.xlane.f32.xlu0 %v1182
    %v1184 = vpop.xlane.xlu0 %1183
    %v1185 = vsel %vm1046, %v1175, 0.0
    %1186 = vadd.xlane.f32.xlu0 %v1185
    %v1187 = vpop.xlane.xlu0 %1186
    %v1188 = vrcp.pop %v1178
    %v1189 = vrcp.pop %v1181
    %v1190 = vrcp.pop %v1184
    %v1191 = vrcp.pop %v1187
    %v1192 = vmul.f32 %v1169, %v1188
    %v1193 = vmul.f32 %v1171, %v1189
    %v1194 = vmul.f32 %v1173, %v1190
    %v1195 = vmul.f32 %v1175, %v1191
    %v1197 = vsel %vm206, %v67, 0
    %v1200 = vsel %vm206, %v68, 0
    %1202 = vmatpush.msra.mxu0 0.0
    %1203 = vmatpush.msra.mxu0 0.0
    %1204 = vmatpush.msra.mxu0 0.0
    %1205 = vmatpush.msra.mxu0 0.0
    %1206 = vmatpush.msra.mxu0 0.0
    %1207 = vmatpush.msra.mxu0 0.0
    %1208 = vmatpush.msra.mxu0 0.0
    %1209 = vmatpush.msra.mxu0 0.0
    %1210 = vmatpush.msra.mxu0 0.0
    %1211 = vmatpush.msra.mxu0 0.0
    %1212 = vmatpush.msra.mxu0 0.0
    %1213 = vmatpush.msra.mxu0 0.0
    %1214 = vmatpush.msra.mxu0 0.0
    %1215 = vmatpush.msra.mxu0 0.0
    %1216 = vmatpush.msra.mxu0 %v1193
    %1217 = vmatpush.msra.mxu0 %v1192
    %1218 = vmatmul.f32.gmra.mxu0 %v1197
    %v1219 = vpop.f32.mrf.mxu0
    %v1220 = vadd.f32 0.0, %v1219
    %1221 = vmatmul.f32.gmra.mxu0 %v1200
    %v1222 = vpop.f32.mrf.mxu0
    %v1223 = vadd.f32 0.0, %v1222
    %1224 = vdwg.mxu0
    %1225 = vxpose.xlu0.b32.start [1/16] %v1192, 128
    %1226 = vxpose.xlu0.b32.cont [2/16] %v1193, 128
    %1227 = vxpose.xlu0.b32.cont [3/16] 0.0, 128
    %1228 = vxpose.xlu0.b32.cont [4/16] 0.0, 128
    %1229 = vxpose.xlu0.b32.cont [5/16] 0.0, 128
    %1230 = vxpose.xlu0.b32.cont [6/16] 0.0, 128
    %1231 = vxpose.xlu0.b32.cont [7/16] 0.0, 128
    %1232 = vxpose.xlu0.b32.cont [8/16] 0.0, 128
    %1233 = vxpose.xlu0.b32.cont [9/16] 0.0, 128
    %1234 = vxpose.xlu0.b32.cont [10/16] 0.0, 128
    %1235 = vxpose.xlu0.b32.cont [11/16] 0.0, 128
    %1236 = vxpose.xlu0.b32.cont [12/16] 0.0, 128
    %1237 = vxpose.xlu0.b32.cont [13/16] 0.0, 128
    %1238 = vxpose.xlu0.b32.cont [14/16] 0.0, 128
    %1239 = vxpose.xlu0.b32.cont [15/16] 0.0, 128
    %1240 = vxpose.xlu0.b32.end [16/16] 0.0, 128
    %v1241 = vpop.trf.xlu0
    %v1242 = vpop.trf.xlu0
    %v1243 = vpop.trf.xlu0
    %v1244 = vpop.trf.xlu0
    %v1245 = vpop.trf.xlu0
    %v1246 = vpop.trf.xlu0
    %v1247 = vpop.trf.xlu0
    %v1248 = vpop.trf.xlu0
    %v1249 = vpop.trf.xlu0
    %v1250 = vpop.trf.xlu0
    %v1251 = vpop.trf.xlu0
    %v1252 = vpop.trf.xlu0
    %v1253 = vpop.trf.xlu0
    %v1254 = vpop.trf.xlu0
    %v1255 = vpop.trf.xlu0
    %v1256 = vpop.trf.xlu0
    %v1258 = vsel %vm206, %v1241, 0
    %1260 = vmatpush.msra.mxu0 0.0
    %1261 = vmatpush.msra.mxu0 0.0
    %1262 = vmatpush.msra.mxu0 0.0
    %1263 = vmatpush.msra.mxu0 0.0
    %1264 = vmatpush.msra.mxu0 0.0
    %1265 = vmatpush.msra.mxu0 0.0
    %1266 = vmatpush.msra.mxu0 0.0
    %1267 = vmatpush.msra.mxu0 0.0
    %1268 = vmatpush.msra.mxu0 0.0
    %1269 = vmatpush.msra.mxu0 0.0
    %1270 = vmatpush.msra.mxu0 0.0
    %1271 = vmatpush.msra.mxu0 0.0
    %1272 = vmatpush.msra.mxu0 0.0
    %1273 = vmatpush.msra.mxu0 0.0
    %1274 = vmatpush.msra.mxu0 %v1223
    %1275 = vmatpush.msra.mxu0 %v1220
    %1276 = vmatmul.f32.gmra.mxu0 %v1258
    %v1277 = vpop.f32.mrf.mxu0
    %v1278 = vadd.f32 0.0, %v1277
    %1279 = vdwg.mxu0
    %v1281 = vsel %vm206, %v99, 0
    %v1284 = vsel %vm206, %v100, 0
    %1286 = vmatpush.msra.mxu0 0.0
    %1287 = vmatpush.msra.mxu0 0.0
    %1288 = vmatpush.msra.mxu0 0.0
    %1289 = vmatpush.msra.mxu0 0.0
    %1290 = vmatpush.msra.mxu0 0.0
    %1291 = vmatpush.msra.mxu0 0.0
    %1292 = vmatpush.msra.mxu0 0.0
    %1293 = vmatpush.msra.mxu0 0.0
    %1294 = vmatpush.msra.mxu0 0.0
    %1295 = vmatpush.msra.mxu0 0.0
    %1296 = vmatpush.msra.mxu0 0.0
    %1297 = vmatpush.msra.mxu0 0.0
    %1298 = vmatpush.msra.mxu0 0.0
    %1299 = vmatpush.msra.mxu0 0.0
    %1300 = vmatpush.msra.mxu0 %v1195
    %1301 = vmatpush.msra.mxu0 %v1194
    %1302 = vmatmul.f32.gmra.mxu0 %v1281
    %v1303 = vpop.f32.mrf.mxu0
    %v1304 = vadd.f32 0.0, %v1303
    %1305 = vmatmul.f32.gmra.mxu0 %v1284
    %v1306 = vpop.f32.mrf.mxu0
    %v1307 = vadd.f32 0.0, %v1306
    %1308 = vdwg.mxu0
    %1309 = vxpose.xlu0.b32.start [1/16] %v1194, 128
    %1310 = vxpose.xlu0.b32.cont [2/16] %v1195, 128
    %1311 = vxpose.xlu0.b32.cont [3/16] 0.0, 128
    %1312 = vxpose.xlu0.b32.cont [4/16] 0.0, 128
    %1313 = vxpose.xlu0.b32.cont [5/16] 0.0, 128
    %1314 = vxpose.xlu0.b32.cont [6/16] 0.0, 128
    %1315 = vxpose.xlu0.b32.cont [7/16] 0.0, 128
    %1316 = vxpose.xlu0.b32.cont [8/16] 0.0, 128
    %1317 = vxpose.xlu0.b32.cont [9/16] 0.0, 128
    %1318 = vxpose.xlu0.b32.cont [10/16] 0.0, 128
    %1319 = vxpose.xlu0.b32.cont [11/16] 0.0, 128
    %1320 = vxpose.xlu0.b32.cont [12/16] 0.0, 128
    %1321 = vxpose.xlu0.b32.cont [13/16] 0.0, 128
    %1322 = vxpose.xlu0.b32.cont [14/16] 0.0, 128
    %1323 = vxpose.xlu0.b32.cont [15/16] 0.0, 128
    %1324 = vxpose.xlu0.b32.end [16/16] 0.0, 128
    %v1325 = vpop.trf.xlu0
    %v1326 = vpop.trf.xlu0
    %v1327 = vpop.trf.xlu0
    %v1328 = vpop.trf.xlu0
    %v1329 = vpop.trf.xlu0
    %v1330 = vpop.trf.xlu0
    %v1331 = vpop.trf.xlu0
    %v1332 = vpop.trf.xlu0
    %v1333 = vpop.trf.xlu0
    %v1334 = vpop.trf.xlu0
    %v1335 = vpop.trf.xlu0
    %v1336 = vpop.trf.xlu0
    %v1337 = vpop.trf.xlu0
    %v1338 = vpop.trf.xlu0
    %v1339 = vpop.trf.xlu0
    %v1340 = vpop.trf.xlu0
    %v1342 = vsel %vm206, %v1325, 0
    %1344 = vmatpush.msra.mxu0 0.0
    %1345 = vmatpush.msra.mxu0 0.0
    %1346 = vmatpush.msra.mxu0 0.0
    %1347 = vmatpush.msra.mxu0 0.0
    %1348 = vmatpush.msra.mxu0 0.0
    %1349 = vmatpush.msra.mxu0 0.0
    %1350 = vmatpush.msra.mxu0 0.0
    %1351 = vmatpush.msra.mxu0 0.0
    %1352 = vmatpush.msra.mxu0 0.0
    %1353 = vmatpush.msra.mxu0 0.0
    %1354 = vmatpush.msra.mxu0 0.0
    %1355 = vmatpush.msra.mxu0 0.0
    %1356 = vmatpush.msra.mxu0 0.0
    %1357 = vmatpush.msra.mxu0 0.0
    %1358 = vmatpush.msra.mxu0 %v1307
    %1359 = vmatpush.msra.mxu0 %v1304
    %1360 = vmatmul.f32.gmra.mxu0 %v1342
    %v1361 = vpop.f32.mrf.mxu0
    %v1362 = vadd.f32 0.0, %v1361
    %1363 = vdwg.mxu0
    %1364 = vmatpush.msra.mxu0 0.0
    %1365 = vmatpush.msra.mxu0 0.0
    %1366 = vmatpush.msra.mxu0 0.0
    %1367 = vmatpush.msra.mxu0 0.0
    %1368 = vmatpush.msra.mxu0 0.0
    %1369 = vmatpush.msra.mxu0 0.0
    %1370 = vmatpush.msra.mxu0 0.0
    %1371 = vmatpush.msra.mxu0 0.0
    %1372 = vmatpush.msra.mxu0 0.0
    %1373 = vmatpush.msra.mxu0 0.0
    %1374 = vmatpush.msra.mxu0 0.0
    %1375 = vmatpush.msra.mxu0 0.0
    %1376 = vmatpush.msra.mxu0 0.0
    %1377 = vmatpush.msra.mxu0 0.0
    %1378 = vmatpush.msra.mxu0 %v659
    %1379 = vmatpush.msra.mxu0 %v658
    %1380 = vmatmul.f32.gmra.mxu0 %v1258
    %v1381 = vpop.f32.mrf.mxu0
    %v1382 = vadd.f32 0.0, %v1381
    %1383 = vdwg.mxu0
    %v1385 = vrot.slane %v1278, 4
    %v1387 = vsel %vm122, %v1278, %v1385
    %v1389 = vrot.slane %v1362, 4
    %v1391 = vsel %vm122, %v1362, %v1389
    %vm1392 = vcmask 195584
    %v1394 = vsel %vm1392, %v1382, 0
    %1396 = vmatpush.msra.mxu0 0.0
    %1397 = vmatpush.msra.mxu0 0.0
    %1398 = vmatpush.msra.mxu0 0.0
    %1399 = vmatpush.msra.mxu0 0.0
    %1400 = vmatpush.msra.mxu0 0.0
    %1401 = vmatpush.msra.mxu0 0.0
    %1402 = vmatpush.msra.mxu0 0.0
    %1403 = vmatpush.msra.mxu0 0.0
    %1404 = vmatpush.msra.mxu0 0.0
    %1405 = vmatpush.msra.mxu0 0.0
    %1406 = vmatpush.msra.mxu0 0.0
    %1407 = vmatpush.msra.mxu0 0.0
    %1408 = vmatpush.msra.mxu0 0.0
    %1409 = vmatpush.msra.mxu0 %v31
    %1410 = vmatpush.msra.mxu0 %v30
    %1411 = vmatpush.msra.mxu0 %v29
    %1412 = vmatmul.f32.gmra.mxu0 %v1394
    %v1413 = vpop.f32.mrf.mxu0
    %v1414 = vadd.f32 0.0, %v1413
    %1415 = vdwg.mxu0
    %1417 = vrot.lane.b32.xlu0 %v1414, 96
    %v1418 = vpop.permute.xlu0 %1417
    %1420 = vxpose.xlu0.b32.start [1/16] %v1418, 128
    %1421 = vxpose.xlu0.b32.cont [2/16] 0.0, 128
    %1422 = vxpose.xlu0.b32.cont [3/16] 0.0, 128
    %1423 = vxpose.xlu0.b32.cont [4/16] 0.0, 128
    %1424 = vxpose.xlu0.b32.cont [5/16] 0.0, 128
    %1425 = vxpose.xlu0.b32.cont [6/16] 0.0, 128
    %1426 = vxpose.xlu0.b32.cont [7/16] 0.0, 128
    %1427 = vxpose.xlu0.b32.cont [8/16] 0.0, 128
    %1428 = vxpose.xlu0.b32.cont [9/16] 0.0, 128
    %1429 = vxpose.xlu0.b32.cont [10/16] 0.0, 128
    %1430 = vxpose.xlu0.b32.cont [11/16] 0.0, 128
    %1431 = vxpose.xlu0.b32.cont [12/16] 0.0, 128
    %1432 = vxpose.xlu0.b32.cont [13/16] 0.0, 128
    %1433 = vxpose.xlu0.b32.cont [14/16] 0.0, 128
    %1434 = vxpose.xlu0.b32.cont [15/16] 0.0, 128
    %1435 = vxpose.xlu0.b32.end [16/16] 0.0, 128
    %v1436 = vpop.trf.xlu0
    %v1437 = vpop.trf.xlu0
    %v1438 = vpop.trf.xlu0
    %v1439 = vpop.trf.xlu0
    %v1440 = vpop.trf.xlu0
    %v1441 = vpop.trf.xlu0
    %v1442 = vpop.trf.xlu0
    %v1443 = vpop.trf.xlu0
    %v1444 = vpop.trf.xlu0
    %v1445 = vpop.trf.xlu0
    %v1446 = vpop.trf.xlu0
    %v1447 = vpop.trf.xlu0
    %v1448 = vpop.trf.xlu0
    %v1449 = vpop.trf.xlu0
    %v1450 = vpop.trf.xlu0
    %v1451 = vpop.trf.xlu0
    %1452 = vset.pattern.permute.xlu0 34
    %1453 = vperm.xlu0 %1452, %v1414
    %v1454 = vpop.permute.xlu0 %1453
    %v1456 = vperm.slane %v1436, 0
    %v1457 = vadd.f32 %v1454, %v1456
    %vm1458 = vcmp.gt.f32.partialorder %v1457, 0.0
    %v1459 = vmul.f32 %v1457, 0.2
    %v1460 = vsel %vm1458, %v1457, %v1459
    %v1461 = vsel %vm206, %v1414, 0.0
    %1462 = vrot.lane.b32.xlu0 %v1414, 95
    %v1463 = vpop.permute.xlu0 %1462
    %1465 = vxpose.xlu0.b32.start [1/16] %v1463, 128
    %1466 = vxpose.xlu0.b32.cont [2/16] 0.0, 128
    %1467 = vxpose.xlu0.b32.cont [3/16] 0.0, 128
    %1468 = vxpose.xlu0.b32.cont [4/16] 0.0, 128
    %1469 = vxpose.xlu0.b32.cont [5/16] 0.0, 128
    %1470 = vxpose.xlu0.b32.cont [6/16] 0.0, 128
    %1471 = vxpose.xlu0.b32.cont [7/16] 0.0, 128
    %1472 = vxpose.xlu0.b32.cont [8/16] 0.0, 128
    %1473 = vxpose.xlu0.b32.cont [9/16] 0.0, 128
    %1474 = vxpose.xlu0.b32.cont [10/16] 0.0, 128
    %1475 = vxpose.xlu0.b32.cont [11/16] 0.0, 128
    %1476 = vxpose.xlu0.b32.cont [12/16] 0.0, 128
    %1477 = vxpose.xlu0.b32.cont [13/16] 0.0, 128
    %1478 = vxpose.xlu0.b32.cont [14/16] 0.0, 128
    %1479 = vxpose.xlu0.b32.cont [15/16] 0.0, 128
    %1480 = vxpose.xlu0.b32.end [16/16] 0.0, 128
    %v1481 = vpop.trf.xlu0
    %v1482 = vpop.trf.xlu0
    %v1483 = vpop.trf.xlu0
    %v1484 = vpop.trf.xlu0
    %v1485 = vpop.trf.xlu0
    %v1486 = vpop.trf.xlu0
    %v1487 = vpop.trf.xlu0
    %v1488 = vpop.trf.xlu0
    %v1489 = vpop.trf.xlu0
    %v1490 = vpop.trf.xlu0
    %v1491 = vpop.trf.xlu0
    %v1492 = vpop.trf.xlu0
    %v1493 = vpop.trf.xlu0
    %v1494 = vpop.trf.xlu0
    %v1495 = vpop.trf.xlu0
    %v1496 = vpop.trf.xlu0
    %1497 = vset.pattern.permute.xlu0 35
    %1498 = vperm.xlu0 %1497, %v1414
    %v1499 = vpop.permute.xlu0 %1498
    %v1501 = vperm.slane %v1481, 0
    %v1502 = vadd.f32 %v1499, %v1501
    %vm1503 = vcmp.gt.f32.partialorder %v1502, 0.0
    %v1504 = vmul.f32 %v1502, 0.2
    %v1505 = vsel %vm1503, %v1502, %v1504
    %v1506 = vsel %vm206, 0.0, %v1414
    %v1508 = vrot.slane %v1505, 4
    %v1510 = vsel %vm122, %v1460, %v1508
    %v1512 = vrot.slane %v1506, 4
    %v1514 = vsel %vm122, %v1461, %v1512
    %vm1515 = vcmp.gt.f32.partialorder %v1387, 0.0
    %v1516 = vsel %vm1515, %v1510, -9e+15
    %v1517 = vsel %vm1046, %v1516, -inf
    %1518 = vmax.xlane.f32.xlu0 %v1517
    %v1519 = vpop.xlane.xlu0 %1518
    %v1520 = vsub.f32 %v1516, %v1519
    %v1521 = vmul.f32 %v1520, 1.442695
    %v1522 = vpow.pop %v1521
    %v1523 = vsel %vm1046, %v1522, 0.0
    %1524 = vadd.xlane.f32.xlu0 %v1523
    %v1525 = vpop.xlane.xlu0 %1524
    %v1526 = vrcp.pop %v1525
    %v1527 = vmul.f32 %v1522, %v1526
    %1528 = vxpose.xlu0.b32.start [1/16] %v1527, 128
    %1529 = vxpose.xlu0.b32.cont [2/16] 0.0, 128
    %1530 = vxpose.xlu0.b32.cont [3/16] 0.0, 128
    %1531 = vxpose.xlu0.b32.cont [4/16] 0.0, 128
    %1532 = vxpose.xlu0.b32.cont [5/16] 0.0, 128
    %1533 = vxpose.xlu0.b32.cont [6/16] 0.0, 128
    %1534 = vxpose.xlu0.b32.cont [7/16] 0.0, 128
    %1535 = vxpose.xlu0.b32.cont [8/16] 0.0, 128
    %1536 = vxpose.xlu0.b32.cont [9/16] 0.0, 128
    %1537 = vxpose.xlu0.b32.cont [10/16] 0.0, 128
    %1538 = vxpose.xlu0.b32.cont [11/16] 0.0, 128
    %1539 = vxpose.xlu0.b32.cont [12/16] 0.0, 128
    %1540 = vxpose.xlu0.b32.cont [13/16] 0.0, 128
    %1541 = vxpose.xlu0.b32.cont [14/16] 0.0, 128
    %1542 = vxpose.xlu0.b32.cont [15/16] 0.0, 128
    %1543 = vxpose.xlu0.b32.end [16/16] 0.0, 128
    %v1544 = vpop.trf.xlu0
    %v1545 = vpop.trf.xlu0
    %v1546 = vpop.trf.xlu0
    %v1547 = vpop.trf.xlu0
    %v1548 = vpop.trf.xlu0
    %v1549 = vpop.trf.xlu0
    %v1550 = vpop.trf.xlu0
    %v1551 = vpop.trf.xlu0
    %v1552 = vpop.trf.xlu0
    %v1553 = vpop.trf.xlu0
    %v1554 = vpop.trf.xlu0
    %v1555 = vpop.trf.xlu0
    %v1556 = vpop.trf.xlu0
    %v1557 = vpop.trf.xlu0
    %v1558 = vpop.trf.xlu0
    %v1559 = vpop.trf.xlu0
    %vm1560 = vcmask 64512
    %v1562 = vsel %vm1560, %v1544, 0
    %1564 = vmatpush.msra.mxu0 0.0
    %1565 = vmatpush.msra.mxu0 0.0
    %1566 = vmatpush.msra.mxu0 0.0
    %1567 = vmatpush.msra.mxu0 0.0
    %1568 = vmatpush.msra.mxu0 0.0
    %1569 = vmatpush.msra.mxu0 0.0
    %1570 = vmatpush.msra.mxu0 0.0
    %1571 = vmatpush.msra.mxu0 0.0
    %1572 = vmatpush.msra.mxu0 0.0
    %1573 = vmatpush.msra.mxu0 0.0
    %1574 = vmatpush.msra.mxu0 0.0
    %1575 = vmatpush.msra.mxu0 0.0
    %1576 = vmatpush.msra.mxu0 0.0
    %1577 = vmatpush.msra.mxu0 0.0
    %1578 = vmatpush.msra.mxu0 0.0
    %1579 = vmatpush.msra.mxu0 %v1514
    %1580 = vmatmul.f32.gmra.mxu0 %v1562
    %v1581 = vpop.f32.mrf.mxu0
    %v1582 = vadd.f32 0.0, %v1581
    %1583 = vdwg.mxu0
    %vm1584 = vcmp.gt.f32.partialorder %v1582, 0.0
    %v1585 = vmin.f32 %v1582, 0.0
    %v1586 = vmul.f32 %v1585, 1.442695
    %v1587 = vpow.pop %v1586
    %v1588 = vsub.f32 %v1587, 1.0
    %v1589 = vsel %vm1584, %v1582, %v1588
    %v1591 = vsel %vm348, %v1589, 0
    %1593 = vmatpush.msra.mxu0 0.0
    %1594 = vmatpush.msra.mxu0 0.0
    %1595 = vmatpush.msra.mxu0 0.0
    %1596 = vmatpush.msra.mxu0 0.0
    %1597 = vmatpush.msra.mxu0 0.0
    %1598 = vmatpush.msra.mxu0 0.0
    %1599 = vmatpush.msra.mxu0 0.0
    %1600 = vmatpush.msra.mxu0 0.0
    %1601 = vmatpush.msra.mxu0 0.0
    %1602 = vmatpush.msra.mxu0 0.0
    %1603 = vmatpush.msra.mxu0 0.0
    %1604 = vmatpush.msra.mxu0 0.0
    %1605 = vmatpush.msra.mxu0 %v35
    %1606 = vmatpush.msra.mxu0 %v34
    %1607 = vmatpush.msra.mxu0 %v33
    %1608 = vmatpush.msra.mxu0 %v32
    %1609 = vmatmul.f32.gmra.mxu0 %v1591
    %v1610 = vpop.f32.mrf.mxu0
    %v1611 = vadd.f32 0.0, %v1610
    %1612 = vdwg.mxu0
    %1614 = vrot.lane.b32.xlu0 %v1611, 80
    %v1615 = vpop.permute.xlu0 %1614
    %1617 = vxpose.xlu0.b32.start [1/16] %v1615, 128
    %1618 = vxpose.xlu0.b32.cont [2/16] 0.0, 128
    %1619 = vxpose.xlu0.b32.cont [3/16] 0.0, 128
    %1620 = vxpose.xlu0.b32.cont [4/16] 0.0, 128
    %1621 = vxpose.xlu0.b32.cont [5/16] 0.0, 128
    %1622 = vxpose.xlu0.b32.cont [6/16] 0.0, 128
    %1623 = vxpose.xlu0.b32.cont [7/16] 0.0, 128
    %1624 = vxpose.xlu0.b32.cont [8/16] 0.0, 128
    %1625 = vxpose.xlu0.b32.cont [9/16] 0.0, 128
    %1626 = vxpose.xlu0.b32.cont [10/16] 0.0, 128
    %1627 = vxpose.xlu0.b32.cont [11/16] 0.0, 128
    %1628 = vxpose.xlu0.b32.cont [12/16] 0.0, 128
    %1629 = vxpose.xlu0.b32.cont [13/16] 0.0, 128
    %1630 = vxpose.xlu0.b32.cont [14/16] 0.0, 128
    %1631 = vxpose.xlu0.b32.cont [15/16] 0.0, 128
    %1632 = vxpose.xlu0.b32.end [16/16] 0.0, 128
    %v1633 = vpop.trf.xlu0
    %v1634 = vpop.trf.xlu0
    %v1635 = vpop.trf.xlu0
    %v1636 = vpop.trf.xlu0
    %v1637 = vpop.trf.xlu0
    %v1638 = vpop.trf.xlu0
    %v1639 = vpop.trf.xlu0
    %v1640 = vpop.trf.xlu0
    %v1641 = vpop.trf.xlu0
    %v1642 = vpop.trf.xlu0
    %v1643 = vpop.trf.xlu0
    %v1644 = vpop.trf.xlu0
    %v1645 = vpop.trf.xlu0
    %v1646 = vpop.trf.xlu0
    %v1647 = vpop.trf.xlu0
    %v1648 = vpop.trf.xlu0
    %1649 = vset.pattern.permute.xlu0 50
    %1650 = vperm.xlu0 %1649, %v1611
    %v1651 = vpop.permute.xlu0 %1650
    %v1653 = vperm.slane %v1633, 0
    %v1654 = vadd.f32 %v1651, %v1653
    %vm1655 = vcmp.gt.f32.partialorder %v1654, 0.0
    %v1656 = vmul.f32 %v1654, 0.2
    %v1657 = vsel %vm1655, %v1654, %v1656
    %1658 = vrot.lane.b32.xlu0 %v1611, 79
    %v1659 = vpop.permute.xlu0 %1658
    %1661 = vxpose.xlu0.b32.start [1/16] %v1659, 128
    %1662 = vxpose.xlu0.b32.cont [2/16] 0.0, 128
    %1663 = vxpose.xlu0.b32.cont [3/16] 0.0, 128
    %1664 = vxpose.xlu0.b32.cont [4/16] 0.0, 128
    %1665 = vxpose.xlu0.b32.cont [5/16] 0.0, 128
    %1666 = vxpose.xlu0.b32.cont [6/16] 0.0, 128
    %1667 = vxpose.xlu0.b32.cont [7/16] 0.0, 128
    %1668 = vxpose.xlu0.b32.cont [8/16] 0.0, 128
    %1669 = vxpose.xlu0.b32.cont [9/16] 0.0, 128
    %1670 = vxpose.xlu0.b32.cont [10/16] 0.0, 128
    %1671 = vxpose.xlu0.b32.cont [11/16] 0.0, 128
    %1672 = vxpose.xlu0.b32.cont [12/16] 0.0, 128
    %1673 = vxpose.xlu0.b32.cont [13/16] 0.0, 128
    %1674 = vxpose.xlu0.b32.cont [14/16] 0.0, 128
    %1675 = vxpose.xlu0.b32.cont [15/16] 0.0, 128
    %1676 = vxpose.xlu0.b32.end [16/16] 0.0, 128
    %v1677 = vpop.trf.xlu0
    %v1678 = vpop.trf.xlu0
    %v1679 = vpop.trf.xlu0
    %v1680 = vpop.trf.xlu0
    %v1681 = vpop.trf.xlu0
    %v1682 = vpop.trf.xlu0
    %v1683 = vpop.trf.xlu0
    %v1684 = vpop.trf.xlu0
    %v1685 = vpop.trf.xlu0
    %v1686 = vpop.trf.xlu0
    %v1687 = vpop.trf.xlu0
    %v1688 = vpop.trf.xlu0
    %v1689 = vpop.trf.xlu0
    %v1690 = vpop.trf.xlu0
    %v1691 = vpop.trf.xlu0
    %v1692 = vpop.trf.xlu0
    %1693 = vset.pattern.permute.xlu0 51
    %1694 = vperm.xlu0 %1693, %v1611
    %v1695 = vpop.permute.xlu0 %1694
    %v1697 = vperm.slane %v1677, 0
    %v1698 = vadd.f32 %v1695, %v1697
    %vm1699 = vcmp.gt.f32.partialorder %v1698, 0.0
    %v1700 = vmul.f32 %v1698, 0.2
    %v1701 = vsel %vm1699, %v1698, %v1700
    %v1703 = vrot.slane %v1701, 4
    %v1705 = vsel %vm122, %v1657, %v1703
    %v1706 = vrot.slane %v1611, 4
    %1707 = vrot.lane.b32.xlu0 %v1706, 104
    %v1708 = vpop.permute.xlu0 %1707
    %v1710 = vsel %vm122, %v1611, %v1708
    %v1711 = vsel %vm1515, %v1705, -9e+15
    %v1712 = vsel %vm1046, %v1711, -inf
    %1713 = vmax.xlane.f32.xlu0 %v1712
    %v1714 = vpop.xlane.xlu0 %1713
    %v1715 = vsub.f32 %v1711, %v1714
    %v1716 = vmul.f32 %v1715, 1.442695
    %v1717 = vpow.pop %v1716
    %v1718 = vsel %vm1046, %v1717, 0.0
    %1719 = vadd.xlane.f32.xlu0 %v1718
    %v1720 = vpop.xlane.xlu0 %1719
    %v1721 = vrcp.pop %v1720
    %v1722 = vmul.f32 %v1717, %v1721
    %1723 = vxpose.xlu0.b32.start [1/16] %v1722, 128
    %1724 = vxpose.xlu0.b32.cont [2/16] 0.0, 128
    %1725 = vxpose.xlu0.b32.cont [3/16] 0.0, 128
    %1726 = vxpose.xlu0.b32.cont [4/16] 0.0, 128
    %1727 = vxpose.xlu0.b32.cont [5/16] 0.0, 128
    %1728 = vxpose.xlu0.b32.cont [6/16] 0.0, 128
    %1729 = vxpose.xlu0.b32.cont [7/16] 0.0, 128
    %1730 = vxpose.xlu0.b32.cont [8/16] 0.0, 128
    %1731 = vxpose.xlu0.b32.cont [9/16] 0.0, 128
    %1732 = vxpose.xlu0.b32.cont [10/16] 0.0, 128
    %1733 = vxpose.xlu0.b32.cont [11/16] 0.0, 128
    %1734 = vxpose.xlu0.b32.cont [12/16] 0.0, 128
    %1735 = vxpose.xlu0.b32.cont [13/16] 0.0, 128
    %1736 = vxpose.xlu0.b32.cont [14/16] 0.0, 128
    %1737 = vxpose.xlu0.b32.cont [15/16] 0.0, 128
    %1738 = vxpose.xlu0.b32.end [16/16] 0.0, 128
    %v1739 = vpop.trf.xlu0
    %v1740 = vpop.trf.xlu0
    %v1741 = vpop.trf.xlu0
    %v1742 = vpop.trf.xlu0
    %v1743 = vpop.trf.xlu0
    %v1744 = vpop.trf.xlu0
    %v1745 = vpop.trf.xlu0
    %v1746 = vpop.trf.xlu0
    %v1747 = vpop.trf.xlu0
    %v1748 = vpop.trf.xlu0
    %v1749 = vpop.trf.xlu0
    %v1750 = vpop.trf.xlu0
    %v1751 = vpop.trf.xlu0
    %v1752 = vpop.trf.xlu0
    %v1753 = vpop.trf.xlu0
    %v1754 = vpop.trf.xlu0
    %v1756 = vsel %vm1560, %v1739, 0
    %1758 = vmatpush.msra.mxu0 0.0
    %1759 = vmatpush.msra.mxu0 0.0
    %1760 = vmatpush.msra.mxu0 0.0
    %1761 = vmatpush.msra.mxu0 0.0
    %1762 = vmatpush.msra.mxu0 0.0
    %1763 = vmatpush.msra.mxu0 0.0
    %1764 = vmatpush.msra.mxu0 0.0
    %1765 = vmatpush.msra.mxu0 0.0
    %1766 = vmatpush.msra.mxu0 0.0
    %1767 = vmatpush.msra.mxu0 0.0
    %1768 = vmatpush.msra.mxu0 0.0
    %1769 = vmatpush.msra.mxu0 0.0
    %1770 = vmatpush.msra.mxu0 0.0
    %1771 = vmatpush.msra.mxu0 0.0
    %1772 = vmatpush.msra.mxu0 0.0
    %1773 = vmatpush.msra.mxu0 %v1710
    %1774 = vmatmul.f32.gmra.mxu0 %v1756
    %v1775 = vpop.f32.mrf.mxu0
    %v1776 = vadd.f32 0.0, %v1775
    %1777 = vdwg.mxu0
    %v1778 = vmul.f32 %v1776, 0.5
    %vm1779 = vcmp.gt.f32.partialorder %v1778, 0.0
    %v1780 = vmin.f32 %v1778, 0.0
    %v1781 = vmul.f32 %v1780, 1.442695
    %v1782 = vpow.pop %v1781
    %v1783 = vsub.f32 %v1782, 1.0
    %v1784 = vsel %vm1779, %v1778, %v1783
    %vm1785 = vcmp.gt.f32.partialorder %v1391, 0.0
    %v1786 = vsel %vm1785, %v1705, -9e+15
    %v1787 = vsel %vm1046, %v1786, -inf
    %1788 = vmax.xlane.f32.xlu0 %v1787
    %v1789 = vpop.xlane.xlu0 %1788
    %v1790 = vsub.f32 %v1786, %v1789
    %v1791 = vmul.f32 %v1790, 1.442695
    %v1792 = vpow.pop %v1791
    %v1793 = vsel %vm1046, %v1792, 0.0
    %1794 = vadd.xlane.f32.xlu0 %v1793
    %v1795 = vpop.xlane.xlu0 %1794
    %v1796 = vrcp.pop %v1795
    %v1797 = vmul.f32 %v1792, %v1796
    %1798 = vxpose.xlu0.b32.start [1/16] %v1797, 128
    %1799 = vxpose.xlu0.b32.cont [2/16] 0.0, 128
    %1800 = vxpose.xlu0.b32.cont [3/16] 0.0, 128
    %1801 = vxpose.xlu0.b32.cont [4/16] 0.0, 128
    %1802 = vxpose.xlu0.b32.cont [5/16] 0.0, 128
    %1803 = vxpose.xlu0.b32.cont [6/16] 0.0, 128
    %1804 = vxpose.xlu0.b32.cont [7/16] 0.0, 128
    %1805 = vxpose.xlu0.b32.cont [8/16] 0.0, 128
    %1806 = vxpose.xlu0.b32.cont [9/16] 0.0, 128
    %1807 = vxpose.xlu0.b32.cont [10/16] 0.0, 128
    %1808 = vxpose.xlu0.b32.cont [11/16] 0.0, 128
    %1809 = vxpose.xlu0.b32.cont [12/16] 0.0, 128
    %1810 = vxpose.xlu0.b32.cont [13/16] 0.0, 128
    %1811 = vxpose.xlu0.b32.cont [14/16] 0.0, 128
    %1812 = vxpose.xlu0.b32.cont [15/16] 0.0, 128
    %1813 = vxpose.xlu0.b32.end [16/16] 0.0, 128
    %v1814 = vpop.trf.xlu0
    %v1815 = vpop.trf.xlu0
    %v1816 = vpop.trf.xlu0
    %v1817 = vpop.trf.xlu0
    %v1818 = vpop.trf.xlu0
    %v1819 = vpop.trf.xlu0
    %v1820 = vpop.trf.xlu0
    %v1821 = vpop.trf.xlu0
    %v1822 = vpop.trf.xlu0
    %v1823 = vpop.trf.xlu0
    %v1824 = vpop.trf.xlu0
    %v1825 = vpop.trf.xlu0
    %v1826 = vpop.trf.xlu0
    %v1827 = vpop.trf.xlu0
    %v1828 = vpop.trf.xlu0
    %v1829 = vpop.trf.xlu0
    %v1831 = vsel %vm1560, %v1814, 0
    %1833 = vmatpush.msra.mxu0 0.0
    %1834 = vmatpush.msra.mxu0 0.0
    %1835 = vmatpush.msra.mxu0 0.0
    %1836 = vmatpush.msra.mxu0 0.0
    %1837 = vmatpush.msra.mxu0 0.0
    %1838 = vmatpush.msra.mxu0 0.0
    %1839 = vmatpush.msra.mxu0 0.0
    %1840 = vmatpush.msra.mxu0 0.0
    %1841 = vmatpush.msra.mxu0 0.0
    %1842 = vmatpush.msra.mxu0 0.0
    %1843 = vmatpush.msra.mxu0 0.0
    %1844 = vmatpush.msra.mxu0 0.0
    %1845 = vmatpush.msra.mxu0 0.0
    %1846 = vmatpush.msra.mxu0 0.0
    %1847 = vmatpush.msra.mxu0 0.0
    %1848 = vmatpush.msra.mxu0 %v1710
    %1849 = vmatmul.f32.gmra.mxu0 %v1831
    %v1850 = vpop.f32.mrf.mxu0
    %v1851 = vadd.f32 0.0, %v1850
    %1852 = vdwg.mxu0
    %v1853 = vmul.f32 %v1851, 0.5
    %vm1854 = vcmp.gt.f32.partialorder %v1853, 0.0
    %v1855 = vmin.f32 %v1853, 0.0
    %v1856 = vmul.f32 %v1855, 1.442695
    %v1857 = vpow.pop %v1856
    %v1858 = vsub.f32 %v1857, 1.0
    %v1859 = vsel %vm1854, %v1853, %v1858
    %v1860 = vsel %vm1392, %v658, -inf
    %v1861 = vsel %vm1392, %v659, -inf
    %v1862 = vmax.f32 %v1860, %v1861
    %v1863 = vrot.slane %v1862, 4
    %v1864 = vmax.f32 %v1862, %v1863
    %v1865 = vrot.slane %v1864, 2
    %v1866 = vmax.f32 %v1864, %v1865
    %v1867 = vrot.slane %v1866, 1
    %v1868 = vmax.f32 %v1866, %v1867
    %vm1869 = vcmask 191488
    %v1870 = vsel %vm1869, %v1784, -inf
    %v1871 = vrot.slane %v1870, 4
    %v1872 = vmax.f32 %v1870, %v1871
    %v1873 = vrot.slane %v1872, 2
    %v1874 = vmax.f32 %v1872, %v1873
    %v1875 = vrot.slane %v1874, 1
    %v1876 = vmax.f32 %v1874, %v1875
    %1878 = vrot.lane.b32.xlu0 %v1876, 24
    %v1879 = vpop.permute.xlu0 %1878
    %v1881 = vsel %vm1392, %v1868, %v1879
    %v1882 = vsel %vm1392, %v783, -inf
    %v1883 = vsel %vm1392, %v784, -inf
    %v1884 = vmax.f32 %v1882, %v1883
    %v1885 = vrot.slane %v1884, 4
    %v1886 = vmax.f32 %v1884, %v1885
    %v1887 = vrot.slane %v1886, 2
    %v1888 = vmax.f32 %v1886, %v1887
    %v1889 = vrot.slane %v1888, 1
    %v1890 = vmax.f32 %v1888, %v1889
    %v1891 = vsel %vm1869, %v1859, -inf
    %v1892 = vrot.slane %v1891, 4
    %v1893 = vmax.f32 %v1891, %v1892
    %v1894 = vrot.slane %v1893, 2
    %v1895 = vmax.f32 %v1893, %v1894
    %v1896 = vrot.slane %v1895, 1
    %v1897 = vmax.f32 %v1895, %v1896
    %1899 = vrot.lane.b32.xlu0 %v1897, 24
    %v1900 = vpop.permute.xlu0 %1899
    %v1902 = vsel %vm1392, %v1890, %v1900
    %v1904 = vrot.slane %v1902, 7
    %vm1906 = vcmask 1040384
    %v1907 = vsel %vm1906, %v1881, %v1904
    %v1908 = vperm.slane %v50, 0
    %vm1909 = vcmask 392192
    %v1911 = vsel %vm1909, %v1907, 0
    %1913 = vmatpush.msra.mxu0 0.0
    %1914 = vmatpush.msra.mxu0 0.0
    %1915 = vmatpush.msra.mxu0 0.0
    %1916 = vmatpush.msra.mxu0 0.0
    %1917 = vmatpush.msra.mxu0 0.0
    %1918 = vmatpush.msra.mxu0 0.0
    %1919 = vmatpush.msra.mxu0 0.0
    %1920 = vmatpush.msra.mxu0 0.0
    %1921 = vmatpush.msra.mxu0 0.0
    %1922 = vmatpush.msra.mxu0 0.0
    %1923 = vmatpush.msra.mxu0 %v49
    %1924 = vmatpush.msra.mxu0 %v48
    %1925 = vmatpush.msra.mxu0 %v47
    %1926 = vmatpush.msra.mxu0 %v46
    %1927 = vmatpush.msra.mxu0 %v45
    %1928 = vmatpush.msra.mxu0 %v44
    %1929 = vmatmul.f32.gmra.mxu0 %v1911
    %v1930 = vpop.f32.mrf.mxu0
    %v1931 = vadd.f32 %v1908, %v1930
    %1932 = vdwg.mxu0
    %vm1933 = vcmask 189440
    %1934 = vst.msk [vmem:[#allocation2] sm:$0x3] %vm1933, %v1931
    // Predicated region
    $region14: #{soft_pooling_dgat_forward.1} parent=1 // pred_check
      _
    $region15: #{soft_pooling_dgat_forward.1} parent=1 // pred_check_branch
      %1936 = sbr.rel (0) target = $region17
    $region16: #{soft_pooling_dgat_forward.1} parent=1 // pred_region
      %1938 = vsyncadd [#allocation3], 0
      %s1940 = sshll.u32 [#allocation2], 4
      %s1941 = int_to_ptr.vmem [resolvable:$true] %s1940
      %s1942 = sshll.u32 %s3, 4
      %s1943 = int_to_ptr.hbm [resolvable:$true] %s1942
      %1945 = dma.vmem_to_hbm [thread:$0]  %s1941, 32, %s1943, [#allocation3]
    $region17: #{soft_pooling_dgat_forward.1} parent=1 // pred_fallthru
      _
    // Predicated region
    $region18: #{soft_pooling_dgat_forward.1} parent=1 // pred_check
      _
    $region19: #{soft_pooling_dgat_forward.1} parent=1 // pred_check_branch
      %1947 = sbr.rel (0) target = $region21
    $region20: #{soft_pooling_dgat_forward.1} parent=1 // pred_region
      %1949 = dma.done [#allocation3], 32
    $region21: #{soft_pooling_dgat_forward.1} parent=1 // pred_fallthru
      _
    %1950 = vsyncpa [#allocation3], 1

</llo_original>
